<compile_context>
chip_gen: v6e
topology: v6e:2x2x1
jax: 0.10.0
libtpu: 0.0.40
codegen_flags: <defaults>
</compile_context>

<pallas_src>
import numpy as np
import jax
import jax.numpy as jnp
from jax import lax
from jax.experimental import pallas as pl
from jax.experimental.pallas import tpu as pltpu

_EPS = 1e-5


# ----------------------------------------------------------------------------
# Pallas kernels
# ----------------------------------------------------------------------------
def _rsm2d_kernel(x_ref, w1_ref, w2_ref, w3_ref, wn_ref, mavg_ref, sd_ref, su_ref,
                  g1_ref, b1_ref, g2_ref, b2_ref, g3_ref, b3_ref, out_ref):
    """Fused RSM2D block in the W-folded, lane-dense layout (rows=N*H, lanes=W*Cout)."""
    f32 = jnp.float32
    wco = out_ref.shape[1]                       # W * Cout (= 128 here)

    def conv3x3(a_bf16, w_ref):
        # One banded bf16 MXU matmul -> three vertical-tap partials side by side.
        t = jnp.dot(a_bf16, w_ref[...], preferred_element_type=f32)       # (NH, 3*wco)
        t0, t1, t2 = t[:, :wco], t[:, wco:2 * wco], t[:, 2 * wco:]        # aligned lane slices
        # dy=0 / dy=2 taps come from the image row above / below.  The 0/1 shift
        # matrices implement the row shift, the top/bottom zero padding, and
        # never mix rows of different images.  Tiny MXU ops -> no relayouts.
        return (t1
                + jnp.dot(sd_ref[...], t0, preferred_element_type=f32)
                + jnp.dot(su_ref[...], t2, preferred_element_type=f32))

    def bn(v, g_ref, b_ref):
        # Train-mode BatchNorm2d in the folded layout.  Per-channel stats =
        # one sublane reduce (over the N*H rows) + a (1,128)x(128,128)
        # averaging matmul that also re-broadcasts to every (x, channel) lane.
        mavg = mavg_ref[...]
        mean_b = jnp.dot(jnp.sum(v, axis=0, keepdims=True), mavg,
                         preferred_element_type=f32)
        d = v - mean_b                           # reused for variance AND normalize
        var_b = jnp.dot(jnp.sum(d * d, axis=0, keepdims=True), mavg,
                        preferred_element_type=f32)
        return d * (lax.rsqrt(var_b + _EPS) * g_ref[...]) + b_ref[...]

    xb = x_ref[...]                                                   # (NH, W*Cin) bf16 (~4 KiB)
    y = jnp.maximum(bn(conv3x3(xb, w1_ref), g1_ref, b1_ref), 0.0)     # relu(bn1(conv1(x)))
    y = jnp.maximum(bn(conv3x3(y.astype(jnp.bfloat16), w2_ref), g2_ref, b2_ref), 0.0)
    y = conv3x3(y.astype(jnp.bfloat16), w3_ref)                       # conv3
    skip = jnp.dot(xb, wn_ref[...], preferred_element_type=f32)       # 1x1 "nin" on x
    out_ref[...] = jnp.maximum(bn(skip + y, g3_ref, b3_ref), 0.0).astype(out_ref.dtype)


def _fc_kernel(f_ref, w_ref, b_ref, o_ref):
    """Linear classifier head: (N, D) x (D, 128-padded) + bias, lane-dense output."""
    o_ref[...] = (jnp.dot(f_ref[...], w_ref[...], preferred_element_type=jnp.float32)
                  + b_ref[...]).astype(o_ref.dtype)


# ----------------------------------------------------------------------------
# pallas_call plumbing
# ----------------------------------------------------------------------------
def _vspec(a):
    zeros = (0,) * a.ndim
    return pl.BlockSpec(a.shape, lambda i, _z=zeros: _z)


def _run(kernel, inputs, out_shape):
    out_zeros = (0,) * len(out_shape.shape)
    return pl.pallas_call(
        kernel,
        out_shape=out_shape,
        grid_spec=pltpu.PrefetchScalarGridSpec(
            num_scalar_prefetch=0,
            grid=(1,),
            in_specs=[_vspec(a) for a in inputs],
            out_specs=pl.BlockSpec(out_shape.shape, lambda i, _z=out_zeros: _z),
        ),
        compiler_params=pltpu.CompilerParams(dimension_semantics=("arbitrary",)),
    )(*inputs)


# ----------------------------------------------------------------------------
# Wrapper-side weight / layout preparation (plumbing only, done outside the kernel)
# ----------------------------------------------------------------------------
def _banded_conv_weight(w_hwio, w_sp):
    """(3,3,Cin,Cout) HWIO -> (W*Cin, 3*W*Cout) banded slab.  Column block dy holds,
    for every (input column, input channel), its contribution to the output row at
    vertical tap dy; horizontal SAME zero padding is folded in by dropping taps."""
    kh, kw, cin, cout = w_hwio.shape
    sel = np.zeros((w_sp, kw, w_sp), np.float32)          # sel[x_in, dx, x_out]
    for dx in range(kw):
        for xo in range(w_sp):
            xi = xo + dx - 1
            if 0 <= xi < w_sp:
                sel[xi, dx, xo] = 1.0
    sel = jnp.asarray(sel)
    slabs = [
        jnp.einsum("adx,dco->acxo", sel, w_hwio[dy]).reshape(w_sp * cin, w_sp * cout)
        for dy in range(kh)
    ]
    return jnp.concatenate(slabs, axis=1)


def _row_shift_mats(n, h):
    """0/1 matrices that move vertical-tap partials one image row down/up
    (zero rows at the top/bottom image boundaries, never across images)."""
    nh = n * h
    sd = np.zeros((nh, nh), np.float32)
    su = np.zeros((nh, nh), np.float32)
    for r in range(nh):
        if r % h != 0:
            sd[r, r - 1] = 1.0
        if r % h != h - 1:
            su[r, r + 1] = 1.0
    return jnp.asarray(sd), jnp.asarray(su)


def _rsm2d_folded(x_nchw, params):
    """RSM2D block; returns activations in the lane-dense folded layout (N*H, W*Cout)."""
    n, cin, h, w = x_nchw.shape
    cout = params["w1"].shape[-1]
    wco = w * cout

    x_slab = jnp.transpose(x_nchw, (0, 2, 3, 1)).reshape(n * h, w * cin).astype(jnp.bfloat16)
    w1 = _banded_conv_weight(params["w1"], w).astype(jnp.bfloat16)
    w2 = _banded_conv_weight(params["w2"], w).astype(jnp.bfloat16)
    w3 = _banded_conv_weight(params["w3"], w).astype(jnp.bfloat16)
    wn = jnp.kron(jnp.eye(w, dtype=jnp.float32),
                  params["wn"].reshape(cin, cout)).astype(jnp.bfloat16)
    mavg = jnp.kron(jnp.ones((w, w), jnp.float32),
                    jnp.eye(cout, dtype=jnp.float32)) / float(n * h * w)
    sd, su = _row_shift_mats(n, h)

    def tile_c(p):       # per-channel BN param -> (1, W*Cout) lane layout
        return jnp.tile(p.astype(jnp.float32), w).reshape(1, wco)

    inputs = (x_slab, w1, w2, w3, wn, mavg, sd, su,
              tile_c(params["g1"]), tile_c(params["b1"]),
              tile_c(params["g2"]), tile_c(params["b2"]),
              tile_c(params["g3"]), tile_c(params["b3"]))
    return _run(_rsm2d_kernel, inputs,
                jax.ShapeDtypeStruct((n * h, wco), jnp.float32))


def rsm2d_forward(x_nchw, params):
    """Encoder block forward. x: (N, Cin, H, W) -> (N, Cout, H, W)."""
    n, _, h, w = x_nchw.shape
    cout = params["w1"].shape[-1]
    folded = _rsm2d_folded(x_nchw, params)
    return jnp.transpose(folded.reshape(n, h, w, cout), (0, 3, 1, 2))


def downstream_forward(x_nchw, params, fc_w, fc_b):
    """DownStreamLinearClassifier.forward: fc(encoder(x)).squeeze(1) -> (N, 2)."""
    n = x_nchw.shape[0]
    n_cls = fc_w.shape[0]
    feats = _rsm2d_folded(x_nchw, params).reshape(n, -1)      # (N, input_depth), NHWC order
    d = feats.shape[1]
    # classifier weights padded to a lane-dense 128-wide slab (wrapper plumbing)
    w_pad = jnp.zeros((d, 128), jnp.float32).at[:, :n_cls].set(fc_w.T)
    b_pad = jnp.zeros((1, 128), jnp.float32).at[:, :n_cls].set(fc_b)
    logits = _run(_fc_kernel, (feats, w_pad, b_pad),
                  jax.ShapeDtypeStruct((n, 128), jnp.float32))
    return logits[:, :n_cls]


# ----------------------------------------------------------------------------
# Pure-JAX references (f32, same semantics) for verification
# ----------------------------------------------------------------------------
def rsm2d_reference(x_nchw, params):
    dn = ("NHWC", "HWIO", "NHWC")
    x = jnp.transpose(x_nchw, (0, 2, 3, 1)).astype(jnp.float32)

    def conv(v, w):
        return lax.conv_general_dilated(v, w, (1, 1), "SAME", dimension_numbers=dn)

    def bn(v, g, b):
        mean = jnp.mean(v, axis=(0, 1, 2), keepdims=True)
        var = jnp.mean((v - mean) ** 2, axis=(0, 1, 2), keepdims=True)
        return (v - mean) / jnp.sqrt(var + _EPS) * g + b

    y = jax.nn.relu(bn(conv(x, params["w1"]), params["g1"], params["b1"]))
    y = jax.nn.relu(bn(conv(y, params["w2"]), params["g2"], params["b2"]))
    y = conv(y, params["w3"])
    skip = conv(x, params["wn"])
    out = jax.nn.relu(bn(skip + y, params["g3"], params["b3"]))
    return jnp.transpose(out, (0, 3, 1, 2))


def downstream_reference(x_nchw, params, fc_w, fc_b):
    feats = rsm2d_reference(x_nchw, params)                    # (N, Cout, H, W)
    n = x_nchw.shape[0]
    f = jnp.transpose(feats, (0, 2, 3, 1)).reshape(n, 1, -1)   # encoder output (N, 1, input_depth)
    logits = jnp.matmul(f, fc_w.T) + fc_b                      # nn.Linear(input_depth, 2)
    return logits[:, 0, :]                                     # .squeeze(1)


# ----------------------------------------------------------------------------
if __name__ == "__main__":
    key = jax.random.PRNGKey(0)
    keys = jax.random.split(key, 13)
    N, Cin, Cout, H, W = 2, 4, 8, 16, 16
    input_depth = Cout * H * W                   # DownStreamLinearClassifier(encoder, input_depth)

    params = {
        "w1": 0.2 * jax.random.normal(keys[0], (3, 3, Cin, Cout), jnp.float32),
        "w2": 0.2 * jax.random.normal(keys[1], (3, 3, Cout, Cout), jnp.float32),
        "w3": 0.2 * jax.random.normal(keys[2], (3, 3, Cout, Cout), jnp.float32),
        "wn": 0.2 * jax.random.normal(keys[3], (1, 1, Cin, Cout), jnp.float32),
        "g1": 1.0 + 0.1 * jax.random.normal(keys[4], (Cout,), jnp.float32),
        "b1": 0.1 * jax.random.normal(keys[5], (Cout,), jnp.float32),
        "g2": 1.0 + 0.1 * jax.random.normal(keys[6], (Cout,), jnp.float32),
        "b2": 0.1 * jax.random.normal(keys[7], (Cout,), jnp.float32),
        "g3": 1.0 + 0.1 * jax.random.normal(keys[8], (Cout,), jnp.float32),
        "b3": 0.1 * jax.random.normal(keys[9], (Cout,), jnp.float32),
    }
    fc_w = 0.02 * jax.random.normal(keys[10], (2, input_depth), jnp.float32)
    fc_b = 0.02 * jax.random.normal(keys[11], (2,), jnp.float32)
    x = jax.random.normal(keys[12], (N, Cin, H, W), jnp.float32)

    # Tolerance reflects bf16 MXU operands (f32 accumulation) vs. pure-f32 reference.
    feat = jax.block_until_ready(rsm2d_forward(x, params))
    feat_ref = jax.block_until_ready(rsm2d_reference(x, params))
    np.testing.assert_allclose(np.asarray(feat), np.asarray(feat_ref), rtol=5e-2, atol=5e-2)

    logits = jax.block_until_ready(downstream_forward(x, params, fc_w, fc_b))
    logits_ref = jax.block_until_ready(downstream_reference(x, params, fc_w, fc_b))
    np.testing.assert_allclose(np.asarray(logits), np.asarray(logits_ref), rtol=5e-2, atol=5e-2)

    print("KERNEL_OK")
</pallas_src>

<mosaic_0001>
module attributes {stable_mosaic.version = 11 : i64} {
  func.func @_rsm2d_kernel(%arg0: i32, %arg1: memref<32x64xbf16, #tpu.memory_space<vmem>>, %arg2: memref<64x384xbf16, #tpu.memory_space<vmem>>, %arg3: memref<128x384xbf16, #tpu.memory_space<vmem>>, %arg4: memref<128x384xbf16, #tpu.memory_space<vmem>>, %arg5: memref<64x128xbf16, #tpu.memory_space<vmem>>, %arg6: memref<128x128xf32, #tpu.memory_space<vmem>>, %arg7: memref<32x32xf32, #tpu.memory_space<vmem>>, %arg8: memref<32x32xf32, #tpu.memory_space<vmem>>, %arg9: memref<1x128xf32, #tpu.memory_space<vmem>>, %arg10: memref<1x128xf32, #tpu.memory_space<vmem>>, %arg11: memref<1x128xf32, #tpu.memory_space<vmem>>, %arg12: memref<1x128xf32, #tpu.memory_space<vmem>>, %arg13: memref<1x128xf32, #tpu.memory_space<vmem>>, %arg14: memref<1x128xf32, #tpu.memory_space<vmem>>, %arg15: memref<32x128xf32, #tpu.memory_space<vmem>>) attributes {dimension_semantics = [#tpu.dimension_semantics<arbitrary>], iteration_bounds = array<i64: 1>, scalar_prefetch = 0 : i64, scratch_operands = 0 : i64, tpu.core_type = #tpu.core_type<tc>, window_params = [{pipeline_mode = #tpu.pipeline_mode<synchronous>, transform_indices = @transform_0, window_bounds = array<i64: 32, 64>}, {pipeline_mode = #tpu.pipeline_mode<synchronous>, transform_indices = @transform_1, window_bounds = array<i64: 64, 384>}, {pipeline_mode = #tpu.pipeline_mode<synchronous>, transform_indices = @transform_2, window_bounds = array<i64: 128, 384>}, {pipeline_mode = #tpu.pipeline_mode<synchronous>, transform_indices = @transform_3, window_bounds = array<i64: 128, 384>}, {pipeline_mode = #tpu.pipeline_mode<synchronous>, transform_indices = @transform_4, window_bounds = array<i64: 64, 128>}, {pipeline_mode = #tpu.pipeline_mode<synchronous>, transform_indices = @transform_5, window_bounds = array<i64: 128, 128>}, {pipeline_mode = #tpu.pipeline_mode<synchronous>, transform_indices = @transform_6, window_bounds = array<i64: 32, 32>}, {pipeline_mode = #tpu.pipeline_mode<synchronous>, transform_indices = @transform_7, window_bounds = array<i64: 32, 32>}, {pipeline_mode = #tpu.pipeline_mode<synchronous>, transform_indices = @transform_8, window_bounds = array<i64: 1, 128>}, {pipeline_mode = #tpu.pipeline_mode<synchronous>, transform_indices = @transform_9, window_bounds = array<i64: 1, 128>}, {pipeline_mode = #tpu.pipeline_mode<synchronous>, transform_indices = @transform_10, window_bounds = array<i64: 1, 128>}, {pipeline_mode = #tpu.pipeline_mode<synchronous>, transform_indices = @transform_11, window_bounds = array<i64: 1, 128>}, {pipeline_mode = #tpu.pipeline_mode<synchronous>, transform_indices = @transform_12, window_bounds = array<i64: 1, 128>}, {pipeline_mode = #tpu.pipeline_mode<synchronous>, transform_indices = @transform_13, window_bounds = array<i64: 1, 128>}, {pipeline_mode = #tpu.pipeline_mode<synchronous>, transform_indices = @transform_14, window_bounds = array<i64: 32, 128>}]} {
    %c0 = arith.constant 0 : index
    %c0_0 = arith.constant 0 : index
    %0 = vector.load %arg1[%c0, %c0_0] : memref<32x64xbf16, #tpu.memory_space<vmem>>, vector<32x64xbf16>
    %c0_1 = arith.constant 0 : index
    %c0_2 = arith.constant 0 : index
    %1 = vector.load %arg2[%c0_1, %c0_2] : memref<64x384xbf16, #tpu.memory_space<vmem>>, vector<64x384xbf16>
    %cst = arith.constant dense<0.000000e+00> : vector<32x384xf32>
    %2 = tpu.matmul %0, %1, %cst {dimension_numbers = #tpu.dot_dimension_numbers<[1], [0], [0], [1], [0, 0, 1, 1], [], []>} : vector<32x64xbf16>, vector<64x384xbf16>, vector<32x384xf32> -> vector<32x384xf32>
    %3 = vector.extract_strided_slice %2 {offsets = [0, 0], sizes = [32, 128], strides = [1, 1]} : vector<32x384xf32> to vector<32x128xf32>
    %4 = vector.extract_strided_slice %2 {offsets = [0, 128], sizes = [32, 128], strides = [1, 1]} : vector<32x384xf32> to vector<32x128xf32>
    %5 = vector.extract_strided_slice %2 {offsets = [0, 256], sizes = [32, 128], strides = [1, 1]} : vector<32x384xf32> to vector<32x128xf32>
    %c0_3 = arith.constant 0 : index
    %c0_4 = arith.constant 0 : index
    %6 = vector.load %arg7[%c0_3, %c0_4] : memref<32x32xf32, #tpu.memory_space<vmem>>, vector<32x32xf32>
    %cst_5 = arith.constant dense<0.000000e+00> : vector<32x128xf32>
    %7 = tpu.matmul %6, %3, %cst_5 {dimension_numbers = #tpu.dot_dimension_numbers<[1], [0], [0], [1], [0, 0, 1, 1], [], []>} : vector<32x32xf32>, vector<32x128xf32>, vector<32x128xf32> -> vector<32x128xf32>
    %8 = arith.addf %4, %7 : vector<32x128xf32>
    %c0_6 = arith.constant 0 : index
    %c0_7 = arith.constant 0 : index
    %9 = vector.load %arg8[%c0_6, %c0_7] : memref<32x32xf32, #tpu.memory_space<vmem>>, vector<32x32xf32>
    %cst_8 = arith.constant dense<0.000000e+00> : vector<32x128xf32>
    %10 = tpu.matmul %9, %5, %cst_8 {dimension_numbers = #tpu.dot_dimension_numbers<[1], [0], [0], [1], [0, 0, 1, 1], [], []>} : vector<32x32xf32>, vector<32x128xf32>, vector<32x128xf32> -> vector<32x128xf32>
    %11 = arith.addf %8, %10 : vector<32x128xf32>
    %c0_9 = arith.constant 0 : index
    %c0_10 = arith.constant 0 : index
    %12 = vector.load %arg6[%c0_9, %c0_10] : memref<128x128xf32, #tpu.memory_space<vmem>>, vector<128x128xf32>
    %cst_11 = arith.constant dense<0.000000e+00> : vector<128xf32>
    %13 = vector.multi_reduction <add>, %11, %cst_11 [0] : vector<32x128xf32> to vector<128xf32>
    %14 = vector.shape_cast %13 : vector<128xf32> to vector<1x128xf32>
    %cst_12 = arith.constant dense<0.000000e+00> : vector<1x128xf32>
    %15 = tpu.matmul %14, %12, %cst_12 {dimension_numbers = #tpu.dot_dimension_numbers<[1], [0], [0], [1], [0, 0, 1, 1], [], []>} : vector<1x128xf32>, vector<128x128xf32>, vector<1x128xf32> -> vector<1x128xf32>
    %16 = vector.broadcast %15 : vector<1x128xf32> to vector<32x128xf32>
    %17 = arith.subf %11, %16 : vector<32x128xf32>
    %18 = arith.mulf %17, %17 : vector<32x128xf32>
    %cst_13 = arith.constant dense<0.000000e+00> : vector<128xf32>
    %19 = vector.multi_reduction <add>, %18, %cst_13 [0] : vector<32x128xf32> to vector<128xf32>
    %20 = vector.shape_cast %19 : vector<128xf32> to vector<1x128xf32>
    %cst_14 = arith.constant dense<0.000000e+00> : vector<1x128xf32>
    %21 = tpu.matmul %20, %12, %cst_14 {dimension_numbers = #tpu.dot_dimension_numbers<[1], [0], [0], [1], [0, 0, 1, 1], [], []>} : vector<1x128xf32>, vector<128x128xf32>, vector<1x128xf32> -> vector<1x128xf32>
    %cst_15 = arith.constant 9.99999974E-6 : f32
    %22 = vector.broadcast %cst_15 : f32 to vector<1x128xf32>
    %23 = arith.addf %21, %22 : vector<1x128xf32>
    %24 = math.rsqrt %23 : vector<1x128xf32>
    %c0_16 = arith.constant 0 : index
    %c0_17 = arith.constant 0 : index
    %25 = vector.load %arg9[%c0_16, %c0_17] : memref<1x128xf32, #tpu.memory_space<vmem>>, vector<1x128xf32>
    %26 = arith.mulf %24, %25 : vector<1x128xf32>
    %27 = vector.broadcast %26 : vector<1x128xf32> to vector<32x128xf32>
    %28 = arith.mulf %17, %27 : vector<32x128xf32>
    %c0_18 = arith.constant 0 : index
    %c0_19 = arith.constant 0 : index
    %29 = vector.load %arg10[%c0_18, %c0_19] : memref<1x128xf32, #tpu.memory_space<vmem>>, vector<1x128xf32>
    %30 = vector.broadcast %29 : vector<1x128xf32> to vector<32x128xf32>
    %31 = arith.addf %28, %30 : vector<32x128xf32>
    %cst_20 = arith.constant 0.000000e+00 : f32
    %32 = vector.broadcast %cst_20 : f32 to vector<32x128xf32>
    %33 = arith.maximumf %31, %32 : vector<32x128xf32>
    %34 = arith.truncf %33 : vector<32x128xf32> to vector<32x128xbf16>
    %c0_21 = arith.constant 0 : index
    %c0_22 = arith.constant 0 : index
    %35 = vector.load %arg3[%c0_21, %c0_22] : memref<128x384xbf16, #tpu.memory_space<vmem>>, vector<128x384xbf16>
    %cst_23 = arith.constant dense<0.000000e+00> : vector<32x384xf32>
    %36 = tpu.matmul %34, %35, %cst_23 {dimension_numbers = #tpu.dot_dimension_numbers<[1], [0], [0], [1], [0, 0, 1, 1], [], []>} : vector<32x128xbf16>, vector<128x384xbf16>, vector<32x384xf32> -> vector<32x384xf32>
    %37 = vector.extract_strided_slice %36 {offsets = [0, 0], sizes = [32, 128], strides = [1, 1]} : vector<32x384xf32> to vector<32x128xf32>
    %38 = vector.extract_strided_slice %36 {offsets = [0, 128], sizes = [32, 128], strides = [1, 1]} : vector<32x384xf32> to vector<32x128xf32>
    %39 = vector.extract_strided_slice %36 {offsets = [0, 256], sizes = [32, 128], strides = [1, 1]} : vector<32x384xf32> to vector<32x128xf32>
    %c0_24 = arith.constant 0 : index
    %c0_25 = arith.constant 0 : index
    %40 = vector.load %arg7[%c0_24, %c0_25] : memref<32x32xf32, #tpu.memory_space<vmem>>, vector<32x32xf32>
    %cst_26 = arith.constant dense<0.000000e+00> : vector<32x128xf32>
    %41 = tpu.matmul %40, %37, %cst_26 {dimension_numbers = #tpu.dot_dimension_numbers<[1], [0], [0], [1], [0, 0, 1, 1], [], []>} : vector<32x32xf32>, vector<32x128xf32>, vector<32x128xf32> -> vector<32x128xf32>
    %42 = arith.addf %38, %41 : vector<32x128xf32>
    %c0_27 = arith.constant 0 : index
    %c0_28 = arith.constant 0 : index
    %43 = vector.load %arg8[%c0_27, %c0_28] : memref<32x32xf32, #tpu.memory_space<vmem>>, vector<32x32xf32>
    %cst_29 = arith.constant dense<0.000000e+00> : vector<32x128xf32>
    %44 = tpu.matmul %43, %39, %cst_29 {dimension_numbers = #tpu.dot_dimension_numbers<[1], [0], [0], [1], [0, 0, 1, 1], [], []>} : vector<32x32xf32>, vector<32x128xf32>, vector<32x128xf32> -> vector<32x128xf32>
    %45 = arith.addf %42, %44 : vector<32x128xf32>
    %c0_30 = arith.constant 0 : index
    %c0_31 = arith.constant 0 : index
    %46 = vector.load %arg6[%c0_30, %c0_31] : memref<128x128xf32, #tpu.memory_space<vmem>>, vector<128x128xf32>
    %cst_32 = arith.constant dense<0.000000e+00> : vector<128xf32>
    %47 = vector.multi_reduction <add>, %45, %cst_32 [0] : vector<32x128xf32> to vector<128xf32>
    %48 = vector.shape_cast %47 : vector<128xf32> to vector<1x128xf32>
    %cst_33 = arith.constant dense<0.000000e+00> : vector<1x128xf32>
    %49 = tpu.matmul %48, %46, %cst_33 {dimension_numbers = #tpu.dot_dimension_numbers<[1], [0], [0], [1], [0, 0, 1, 1], [], []>} : vector<1x128xf32>, vector<128x128xf32>, vector<1x128xf32> -> vector<1x128xf32>
    %50 = vector.broadcast %49 : vector<1x128xf32> to vector<32x128xf32>
    %51 = arith.subf %45, %50 : vector<32x128xf32>
    %52 = arith.mulf %51, %51 : vector<32x128xf32>
    %cst_34 = arith.constant dense<0.000000e+00> : vector<128xf32>
    %53 = vector.multi_reduction <add>, %52, %cst_34 [0] : vector<32x128xf32> to vector<128xf32>
    %54 = vector.shape_cast %53 : vector<128xf32> to vector<1x128xf32>
    %cst_35 = arith.constant dense<0.000000e+00> : vector<1x128xf32>
    %55 = tpu.matmul %54, %46, %cst_35 {dimension_numbers = #tpu.dot_dimension_numbers<[1], [0], [0], [1], [0, 0, 1, 1], [], []>} : vector<1x128xf32>, vector<128x128xf32>, vector<1x128xf32> -> vector<1x128xf32>
    %cst_36 = arith.constant 9.99999974E-6 : f32
    %56 = vector.broadcast %cst_36 : f32 to vector<1x128xf32>
    %57 = arith.addf %55, %56 : vector<1x128xf32>
    %58 = math.rsqrt %57 : vector<1x128xf32>
    %c0_37 = arith.constant 0 : index
    %c0_38 = arith.constant 0 : index
    %59 = vector.load %arg11[%c0_37, %c0_38] : memref<1x128xf32, #tpu.memory_space<vmem>>, vector<1x128xf32>
    %60 = arith.mulf %58, %59 : vector<1x128xf32>
    %61 = vector.broadcast %60 : vector<1x128xf32> to vector<32x128xf32>
    %62 = arith.mulf %51, %61 : vector<32x128xf32>
    %c0_39 = arith.constant 0 : index
    %c0_40 = arith.constant 0 : index
    %63 = vector.load %arg12[%c0_39, %c0_40] : memref<1x128xf32, #tpu.memory_space<vmem>>, vector<1x128xf32>
    %64 = vector.broadcast %63 : vector<1x128xf32> to vector<32x128xf32>
    %65 = arith.addf %62, %64 : vector<32x128xf32>
    %cst_41 = arith.constant 0.000000e+00 : f32
    %66 = vector.broadcast %cst_41 : f32 to vector<32x128xf32>
    %67 = arith.maximumf %65, %66 : vector<32x128xf32>
    %68 = arith.truncf %67 : vector<32x128xf32> to vector<32x128xbf16>
    %c0_42 = arith.constant 0 : index
    %c0_43 = arith.constant 0 : index
    %69 = vector.load %arg4[%c0_42, %c0_43] : memref<128x384xbf16, #tpu.memory_space<vmem>>, vector<128x384xbf16>
    %cst_44 = arith.constant dense<0.000000e+00> : vector<32x384xf32>
    %70 = tpu.matmul %68, %69, %cst_44 {dimension_numbers = #tpu.dot_dimension_numbers<[1], [0], [0], [1], [0, 0, 1, 1], [], []>} : vector<32x128xbf16>, vector<128x384xbf16>, vector<32x384xf32> -> vector<32x384xf32>
    %71 = vector.extract_strided_slice %70 {offsets = [0, 0], sizes = [32, 128], strides = [1, 1]} : vector<32x384xf32> to vector<32x128xf32>
    %72 = vector.extract_strided_slice %70 {offsets = [0, 128], sizes = [32, 128], strides = [1, 1]} : vector<32x384xf32> to vector<32x128xf32>
    %73 = vector.extract_strided_slice %70 {offsets = [0, 256], sizes = [32, 128], strides = [1, 1]} : vector<32x384xf32> to vector<32x128xf32>
    %c0_45 = arith.constant 0 : index
    %c0_46 = arith.constant 0 : index
    %74 = vector.load %arg7[%c0_45, %c0_46] : memref<32x32xf32, #tpu.memory_space<vmem>>, vector<32x32xf32>
    %cst_47 = arith.constant dense<0.000000e+00> : vector<32x128xf32>
    %75 = tpu.matmul %74, %71, %cst_47 {dimension_numbers = #tpu.dot_dimension_numbers<[1], [0], [0], [1], [0, 0, 1, 1], [], []>} : vector<32x32xf32>, vector<32x128xf32>, vector<32x128xf32> -> vector<32x128xf32>
    %76 = arith.addf %72, %75 : vector<32x128xf32>
    %c0_48 = arith.constant 0 : index
    %c0_49 = arith.constant 0 : index
    %77 = vector.load %arg8[%c0_48, %c0_49] : memref<32x32xf32, #tpu.memory_space<vmem>>, vector<32x32xf32>
    %cst_50 = arith.constant dense<0.000000e+00> : vector<32x128xf32>
    %78 = tpu.matmul %77, %73, %cst_50 {dimension_numbers = #tpu.dot_dimension_numbers<[1], [0], [0], [1], [0, 0, 1, 1], [], []>} : vector<32x32xf32>, vector<32x128xf32>, vector<32x128xf32> -> vector<32x128xf32>
    %79 = arith.addf %76, %78 : vector<32x128xf32>
    %c0_51 = arith.constant 0 : index
    %c0_52 = arith.constant 0 : index
    %80 = vector.load %arg5[%c0_51, %c0_52] : memref<64x128xbf16, #tpu.memory_space<vmem>>, vector<64x128xbf16>
    %cst_53 = arith.constant dense<0.000000e+00> : vector<32x128xf32>
    %81 = tpu.matmul %0, %80, %cst_53 {dimension_numbers = #tpu.dot_dimension_numbers<[1], [0], [0], [1], [0, 0, 1, 1], [], []>} : vector<32x64xbf16>, vector<64x128xbf16>, vector<32x128xf32> -> vector<32x128xf32>
    %82 = arith.addf %81, %79 : vector<32x128xf32>
    %c0_54 = arith.constant 0 : index
    %c0_55 = arith.constant 0 : index
    %83 = vector.load %arg6[%c0_54, %c0_55] : memref<128x128xf32, #tpu.memory_space<vmem>>, vector<128x128xf32>
    %cst_56 = arith.constant dense<0.000000e+00> : vector<128xf32>
    %84 = vector.multi_reduction <add>, %82, %cst_56 [0] : vector<32x128xf32> to vector<128xf32>
    %85 = vector.shape_cast %84 : vector<128xf32> to vector<1x128xf32>
    %cst_57 = arith.constant dense<0.000000e+00> : vector<1x128xf32>
    %86 = tpu.matmul %85, %83, %cst_57 {dimension_numbers = #tpu.dot_dimension_numbers<[1], [0], [0], [1], [0, 0, 1, 1], [], []>} : vector<1x128xf32>, vector<128x128xf32>, vector<1x128xf32> -> vector<1x128xf32>
    %87 = vector.broadcast %86 : vector<1x128xf32> to vector<32x128xf32>
    %88 = arith.subf %82, %87 : vector<32x128xf32>
    %89 = arith.mulf %88, %88 : vector<32x128xf32>
    %cst_58 = arith.constant dense<0.000000e+00> : vector<128xf32>
    %90 = vector.multi_reduction <add>, %89, %cst_58 [0] : vector<32x128xf32> to vector<128xf32>
    %91 = vector.shape_cast %90 : vector<128xf32> to vector<1x128xf32>
    %cst_59 = arith.constant dense<0.000000e+00> : vector<1x128xf32>
    %92 = tpu.matmul %91, %83, %cst_59 {dimension_numbers = #tpu.dot_dimension_numbers<[1], [0], [0], [1], [0, 0, 1, 1], [], []>} : vector<1x128xf32>, vector<128x128xf32>, vector<1x128xf32> -> vector<1x128xf32>
    %cst_60 = arith.constant 9.99999974E-6 : f32
    %93 = vector.broadcast %cst_60 : f32 to vector<1x128xf32>
    %94 = arith.addf %92, %93 : vector<1x128xf32>
    %95 = math.rsqrt %94 : vector<1x128xf32>
    %c0_61 = arith.constant 0 : index
    %c0_62 = arith.constant 0 : index
    %96 = vector.load %arg13[%c0_61, %c0_62] : memref<1x128xf32, #tpu.memory_space<vmem>>, vector<1x128xf32>
    %97 = arith.mulf %95, %96 : vector<1x128xf32>
    %98 = vector.broadcast %97 : vector<1x128xf32> to vector<32x128xf32>
    %99 = arith.mulf %88, %98 : vector<32x128xf32>
    %c0_63 = arith.constant 0 : index
    %c0_64 = arith.constant 0 : index
    %100 = vector.load %arg14[%c0_63, %c0_64] : memref<1x128xf32, #tpu.memory_space<vmem>>, vector<1x128xf32>
    %101 = vector.broadcast %100 : vector<1x128xf32> to vector<32x128xf32>
    %102 = arith.addf %99, %101 : vector<32x128xf32>
    %cst_65 = arith.constant 0.000000e+00 : f32
    %103 = vector.broadcast %cst_65 : f32 to vector<32x128xf32>
    %104 = arith.maximumf %102, %103 : vector<32x128xf32>
    %c0_66 = arith.constant 0 : index
    %c0_67 = arith.constant 0 : index
    %105 = vector.load %arg15[%c0_66, %c0_67] : memref<32x128xf32, #tpu.memory_space<vmem>>, vector<32x128xf32>
    tpu.vector_store %arg15[%c0_66, %c0_67], %104 {strides = array<i32>} : memref<32x128xf32, #tpu.memory_space<vmem>>, vector<32x128xf32>,
    return
  }
  func.func @transform_0(%arg0: i32) -> (i32, i32) {
    %c0_i32 = arith.constant 0 : i32
    %c0_i32_0 = arith.constant 0 : i32
    %c0_i32_1 = arith.constant 0 : i32
    return %c0_i32, %c0_i32_0 : i32, i32
  }
  func.func @transform_1(%arg0: i32) -> (i32, i32) {
    %c0_i32 = arith.constant 0 : i32
    %c0_i32_0 = arith.constant 0 : i32
    %c0_i32_1 = arith.constant 0 : i32
    return %c0_i32, %c0_i32_0 : i32, i32
  }
  func.func @transform_2(%arg0: i32) -> (i32, i32) {
    %c0_i32 = arith.constant 0 : i32
    %c0_i32_0 = arith.constant 0 : i32
    %c0_i32_1 = arith.constant 0 : i32
    return %c0_i32, %c0_i32_0 : i32, i32
  }
  func.func @transform_3(%arg0: i32) -> (i32, i32) {
    %c0_i32 = arith.constant 0 : i32
    %c0_i32_0 = arith.constant 0 : i32
    %c0_i32_1 = arith.constant 0 : i32
    return %c0_i32, %c0_i32_0 : i32, i32
  }
  func.func @transform_4(%arg0: i32) -> (i32, i32) {
    %c0_i32 = arith.constant 0 : i32
    %c0_i32_0 = arith.constant 0 : i32
    %c0_i32_1 = arith.constant 0 : i32
    return %c0_i32, %c0_i32_0 : i32, i32
  }
  func.func @transform_5(%arg0: i32) -> (i32, i32) {
    %c0_i32 = arith.constant 0 : i32
    %c0_i32_0 = arith.constant 0 : i32
    %c0_i32_1 = arith.constant 0 : i32
    return %c0_i32, %c0_i32_0 : i32, i32
  }
  func.func @transform_6(%arg0: i32) -> (i32, i32) {
    %c0_i32 = arith.constant 0 : i32
    %c0_i32_0 = arith.constant 0 : i32
    %c0_i32_1 = arith.constant 0 : i32
    return %c0_i32, %c0_i32_0 : i32, i32
  }
  func.func @transform_7(%arg0: i32) -> (i32, i32) {
    %c0_i32 = arith.constant 0 : i32
    %c0_i32_0 = arith.constant 0 : i32
    %c0_i32_1 = arith.constant 0 : i32
    return %c0_i32, %c0_i32_0 : i32, i32
  }
  func.func @transform_8(%arg0: i32) -> (i32, i32) {
    %c0_i32 = arith.constant 0 : i32
    %c0_i32_0 = arith.constant 0 : i32
    %c0_i32_1 = arith.constant 0 : i32
    return %c0_i32, %c0_i32_0 : i32, i32
  }
  func.func @transform_9(%arg0: i32) -> (i32, i32) {
    %c0_i32 = arith.constant 0 : i32
    %c0_i32_0 = arith.constant 0 : i32
    %c0_i32_1 = arith.constant 0 : i32
    return %c0_i32, %c0_i32_0 : i32, i32
  }
  func.func @transform_10(%arg0: i32) -> (i32, i32) {
    %c0_i32 = arith.constant 0 : i32
    %c0_i32_0 = arith.constant 0 : i32
    %c0_i32_1 = arith.constant 0 : i32
    return %c0_i32, %c0_i32_0 : i32, i32
  }
  func.func @transform_11(%arg0: i32) -> (i32, i32) {
    %c0_i32 = arith.constant 0 : i32
    %c0_i32_0 = arith.constant 0 : i32
    %c0_i32_1 = arith.constant 0 : i32
    return %c0_i32, %c0_i32_0 : i32, i32
  }
  func.func @transform_12(%arg0: i32) -> (i32, i32) {
    %c0_i32 = arith.constant 0 : i32
    %c0_i32_0 = arith.constant 0 : i32
    %c0_i32_1 = arith.constant 0 : i32
    return %c0_i32, %c0_i32_0 : i32, i32
  }
  func.func @transform_13(%arg0: i32) -> (i32, i32) {
    %c0_i32 = arith.constant 0 : i32
    %c0_i32_0 = arith.constant 0 : i32
    %c0_i32_1 = arith.constant 0 : i32
    return %c0_i32, %c0_i32_0 : i32, i32
  }
  func.func @transform_14(%arg0: i32) -> (i32, i32) {
    %c0_i32 = arith.constant 0 : i32
    %c0_i32_0 = arith.constant 0 : i32
    %c0_i32_1 = arith.constant 0 : i32
    return %c0_i32, %c0_i32_0 : i32, i32
  }
}

</mosaic_0001>

<llo_original>
// kernel: tpu_custom_call.1
$region0: #{tpu_custom_call.1}
  #allocation0 [shape = 'u32[]', space=smem, size = 0x4, offset = 0x4, fixed_abs, tag = 'smem constant byte address 0x4 - core index']
  #allocation1 [shape = 'u32[144,128]{1,0:T(1,128)}', space=vmem, size = 0x12000, scoped, tag = 'internal scratch']
  %s0 = inlined_call_operand.hbm [shape: bf16[32,64], index: 0, kind: input, shape index: {}]
  %s1 = inlined_call_operand.hbm [shape: bf16[64,384], index: 1, kind: input, shape index: {}]
  %s2 = inlined_call_operand.hbm [shape: bf16[128,384], index: 2, kind: input, shape index: {}]
  %s3 = inlined_call_operand.hbm [shape: bf16[128,384], index: 3, kind: input, shape index: {}]
  %s4 = inlined_call_operand.hbm [shape: bf16[64,128], index: 4, kind: input, shape index: {}]
  %s5 = inlined_call_operand.hbm [shape: f32[128,128], index: 5, kind: input, shape index: {}]
  %s6 = inlined_call_operand.hbm [shape: f32[32,32], index: 6, kind: input, shape index: {}]
  %s7 = inlined_call_operand.hbm [shape: f32[32,32], index: 7, kind: input, shape index: {}]
  %s8 = inlined_call_operand.vmem [shape: f32[1,128], index: 8, kind: input, shape index: {}]
  %s9 = inlined_call_operand.vmem [shape: f32[1,128], index: 9, kind: input, shape index: {}]
  %s10 = inlined_call_operand.vmem [shape: f32[1,128], index: 10, kind: input, shape index: {}]
  %s11 = inlined_call_operand.vmem [shape: f32[1,128], index: 11, kind: input, shape index: {}]
  %s12 = inlined_call_operand.vmem [shape: f32[1,128], index: 12, kind: input, shape index: {}]
  %s13 = inlined_call_operand.vmem [shape: f32[1,128], index: 13, kind: input, shape index: {}]
  %s14 = inlined_call_operand.hbm [shape: f32[32,128], index: 14, kind: output, shape index: {}]
  %s15 = sld [smem:[#allocation0]]
  $region98: #{tpu_custom_call.1} parent=0
    _
  %s17 = ssub.s32 1, %s15
  %s18 = scalar_select 0, %s17, %s15
  $region1: #{tpu_custom_call.1} parent=0
    #allocation2 [shape = 'u8[8192]{0}', space=vmem, size = 0x2000, scoped, tag = 'input window, operand 0, single buffered']
    #allocation3 [shape = 's32[1]{0}', space=sflag, size = 0x4, scoped, tag = 'scoped memory for tpu_custom_call.1']
    #allocation4 [shape = 's32[1]{0}', space=sflag, size = 0x4, scoped, tag = 'scoped memory for tpu_custom_call.1']
    #allocation5 [shape = 'u8[49152]{0}', space=vmem, size = 0xc000, scoped, tag = 'input window, operand 1, single buffered']
    #allocation6 [shape = 's32[1]{0}', space=sflag, size = 0x4, scoped, tag = 'scoped memory for tpu_custom_call.1']
    #allocation7 [shape = 'u8[98304]{0}', space=vmem, size = 0x18000, scoped, tag = 'input window, operand 2, single buffered']
    #allocation8 [shape = 'u8[98304]{0}', space=vmem, size = 0x18000, scoped, tag = 'input window, operand 3, single buffered']
    #allocation9 [shape = 's32[1]{0}', space=sflag, size = 0x4, scoped, tag = 'scoped memory for tpu_custom_call.1']
    #allocation10 [shape = 'u8[16384]{0}', space=vmem, size = 0x4000, scoped, tag = 'input window, operand 4, single buffered']
    #allocation11 [shape = 'u8[65536]{0}', space=vmem, size = 0x10000, scoped, tag = 'input window, operand 5, single buffered']
    #allocation12 [shape = 's32[1]{0}', space=sflag, size = 0x4, scoped, tag = 'scoped memory for tpu_custom_call.1']
    #allocation13 [shape = 'u8[16384]{0}', space=vmem, size = 0x4000, scoped, tag = 'input window, operand 6, single buffered']
    #allocation14 [shape = 'u8[16384]{0}', space=vmem, size = 0x4000, scoped, tag = 'input window, operand 7, single buffered']
    #allocation15 [shape = 's32[1]{0}', space=sflag, size = 0x4, scoped, tag = 'scoped memory for tpu_custom_call.1']
    #allocation16 [shape = 'u8[16384]{0}', space=vmem, size = 0x4000, scoped, tag = 'output window, operand 0, single buffered']
    %19 = vsyncpa [#allocation3], 0
    %20 = vsyncpa [#allocation6], 0
    %21 = vsyncpa [#allocation9], 0
    %22 = vsyncpa [#allocation12], 0
    %23 = vsyncpa [#allocation15], 0
    %24 = vsyncpa [#allocation4], 0
    // Predicated region
    $region2: #{tpu_custom_call.1} parent=1 // pred_check
      _
    $region3: #{tpu_custom_call.1} parent=1 // pred_check_branch
      %26 = sbr.rel (0) target = $region5
    $region4: #{tpu_custom_call.1} parent=1 // pred_region
      %s28 = ssub.s32 256, 256
      %29 = vsyncadd [#allocation3], %s28
      %s30 = sshll.u32 [#allocation2], 4
      %s31 = int_to_ptr.vmem [resolvable:$true] %s30
      %36 = dma.hbm_to_vmem [thread:$0]  %s0, 256, %s31, [#allocation3], 64, 64, 4
    $region5: #{tpu_custom_call.1} parent=1 // pred_fallthru
      _
    // Predicated region
    $region6: #{tpu_custom_call.1} parent=1 // pred_check
      _
    $region7: #{tpu_custom_call.1} parent=1 // pred_check_branch
      %38 = sbr.rel (0) target = $region9
    $region8: #{tpu_custom_call.1} parent=1 // pred_region
      %s40 = ssub.s32 1536, 1536
      %41 = vsyncadd [#allocation6], %s40
      %s42 = sshll.u32 [#allocation5], 4
      %s43 = int_to_ptr.vmem [resolvable:$true] %s42
      %48 = dma.hbm_to_vmem [thread:$0]  %s1, 1536, %s43, [#allocation6], 192, 192, 12
    $region9: #{tpu_custom_call.1} parent=1 // pred_fallthru
      _
    // Predicated region
    $region10: #{tpu_custom_call.1} parent=1 // pred_check
      _
    $region11: #{tpu_custom_call.1} parent=1 // pred_check_branch
      %50 = sbr.rel (0) target = $region13
    $region12: #{tpu_custom_call.1} parent=1 // pred_region
      %s52 = ssub.s32 3072, 3072
      %53 = vsyncadd [#allocation6], %s52
      %s54 = sshll.u32 [#allocation7], 4
      %s55 = int_to_ptr.vmem [resolvable:$true] %s54
      %60 = dma.hbm_to_vmem [thread:$0]  %s2, 3072, %s55, [#allocation6], 192, 192, 12
    $region13: #{tpu_custom_call.1} parent=1 // pred_fallthru
      _
    // Predicated region
    $region14: #{tpu_custom_call.1} parent=1 // pred_check
      _
    $region15: #{tpu_custom_call.1} parent=1 // pred_check_branch
      %62 = sbr.rel (0) target = $region17
    $region16: #{tpu_custom_call.1} parent=1 // pred_region
      %s64 = ssub.s32 3072, 3072
      %65 = vsyncadd [#allocation9], %s64
      %s66 = sshll.u32 [#allocation8], 4
      %s67 = int_to_ptr.vmem [resolvable:$true] %s66
      %72 = dma.hbm_to_vmem [thread:$0]  %s3, 3072, %s67, [#allocation9], 192, 192, 12
    $region17: #{tpu_custom_call.1} parent=1 // pred_fallthru
      _
    // Predicated region
    $region18: #{tpu_custom_call.1} parent=1 // pred_check
      _
    $region19: #{tpu_custom_call.1} parent=1 // pred_check_branch
      %74 = sbr.rel (0) target = $region21
    $region20: #{tpu_custom_call.1} parent=1 // pred_region
      %s76 = ssub.s32 512, 512
      %77 = vsyncadd [#allocation9], %s76
      %s78 = sshll.u32 [#allocation10], 4
      %s79 = int_to_ptr.vmem [resolvable:$true] %s78
      %84 = dma.hbm_to_vmem [thread:$0]  %s4, 512, %s79, [#allocation9], 64, 64, 4
    $region21: #{tpu_custom_call.1} parent=1 // pred_fallthru
      _
    // Predicated region
    $region22: #{tpu_custom_call.1} parent=1 // pred_check
      _
    $region23: #{tpu_custom_call.1} parent=1 // pred_check_branch
      %86 = sbr.rel (0) target = $region25
    $region24: #{tpu_custom_call.1} parent=1 // pred_region
      %s88 = ssub.s32 2048, 2048
      %89 = vsyncadd [#allocation12], %s88
      %s90 = sshll.u32 [#allocation11], 4
      %s91 = int_to_ptr.vmem [resolvable:$true] %s90
      %96 = dma.hbm_to_vmem [thread:$0]  %s5, 2048, %s91, [#allocation12], 128, 128, 8
    $region25: #{tpu_custom_call.1} parent=1 // pred_fallthru
      _
    // Predicated region
    $region26: #{tpu_custom_call.1} parent=1 // pred_check
      _
    $region27: #{tpu_custom_call.1} parent=1 // pred_check_branch
      %98 = sbr.rel (0) target = $region29
    $region28: #{tpu_custom_call.1} parent=1 // pred_region
      %s100 = ssub.s32 512, 512
      %101 = vsyncadd [#allocation12], %s100
      %s102 = sshll.u32 [#allocation13], 4
      %s103 = int_to_ptr.vmem [resolvable:$true] %s102
      %108 = dma.hbm_to_vmem [thread:$0]  %s6, 512, %s103, [#allocation12], 128, 128, 8
    $region29: #{tpu_custom_call.1} parent=1 // pred_fallthru
      _
    // Predicated region
    $region30: #{tpu_custom_call.1} parent=1 // pred_check
      _
    $region31: #{tpu_custom_call.1} parent=1 // pred_check_branch
      %110 = sbr.rel (0) target = $region33
    $region32: #{tpu_custom_call.1} parent=1 // pred_region
      %s112 = ssub.s32 512, 512
      %113 = vsyncadd [#allocation15], %s112
      %s114 = sshll.u32 [#allocation14], 4
      %s115 = int_to_ptr.vmem [resolvable:$true] %s114
      %120 = dma.hbm_to_vmem [thread:$0]  %s7, 512, %s115, [#allocation15], 128, 128, 8
    $region33: #{tpu_custom_call.1} parent=1 // pred_fallthru
      _
    // Predicated region
    $region34: #{tpu_custom_call.1} parent=1 // pred_check
      _
    $region35: #{tpu_custom_call.1} parent=1 // pred_check_branch
      %122 = sbr.rel (0) target = $region37
    $region36: #{tpu_custom_call.1} parent=1 // pred_region
      _
    $region37: #{tpu_custom_call.1} parent=1 // pred_fallthru
      _
    // Predicated region
    $region38: #{tpu_custom_call.1} parent=1 // pred_check
      _
    $region39: #{tpu_custom_call.1} parent=1 // pred_check_branch
      %124 = sbr.rel (0) target = $region41
    $region40: #{tpu_custom_call.1} parent=1 // pred_region
      _
    $region41: #{tpu_custom_call.1} parent=1 // pred_fallthru
      _
    // Predicated region
    $region42: #{tpu_custom_call.1} parent=1 // pred_check
      _
    $region43: #{tpu_custom_call.1} parent=1 // pred_check_branch
      %126 = sbr.rel (0) target = $region45
    $region44: #{tpu_custom_call.1} parent=1 // pred_region
      _
    $region45: #{tpu_custom_call.1} parent=1 // pred_fallthru
      _
    // Predicated region
    $region46: #{tpu_custom_call.1} parent=1 // pred_check
      _
    $region47: #{tpu_custom_call.1} parent=1 // pred_check_branch
      %128 = sbr.rel (0) target = $region49
    $region48: #{tpu_custom_call.1} parent=1 // pred_region
      _
    $region49: #{tpu_custom_call.1} parent=1 // pred_fallthru
      _
    // Predicated region
    $region50: #{tpu_custom_call.1} parent=1 // pred_check
      _
    $region51: #{tpu_custom_call.1} parent=1 // pred_check_branch
      %130 = sbr.rel (0) target = $region53
    $region52: #{tpu_custom_call.1} parent=1 // pred_region
      _
    $region53: #{tpu_custom_call.1} parent=1 // pred_fallthru
      _
    // Predicated region
    $region54: #{tpu_custom_call.1} parent=1 // pred_check
      _
    $region55: #{tpu_custom_call.1} parent=1 // pred_check_branch
      %132 = sbr.rel (0) target = $region57
    $region56: #{tpu_custom_call.1} parent=1 // pred_region
      _
    $region57: #{tpu_custom_call.1} parent=1 // pred_fallthru
      _
    // Predicated region
    $region58: #{tpu_custom_call.1} parent=1 // pred_check
      _
    $region59: #{tpu_custom_call.1} parent=1 // pred_check_branch
      %134 = sbr.rel (0) target = $region61
    $region60: #{tpu_custom_call.1} parent=1 // pred_region
      %135 = dma.done [#allocation3], 256
    $region61: #{tpu_custom_call.1} parent=1 // pred_fallthru
      _
    // Predicated region
    $region62: #{tpu_custom_call.1} parent=1 // pred_check
      _
    $region63: #{tpu_custom_call.1} parent=1 // pred_check_branch
      %137 = sbr.rel (0) target = $region65
    $region64: #{tpu_custom_call.1} parent=1 // pred_region
      %138 = dma.done [#allocation6], 1536
    $region65: #{tpu_custom_call.1} parent=1 // pred_fallthru
      _
    // Predicated region
    $region66: #{tpu_custom_call.1} parent=1 // pred_check
      _
    $region67: #{tpu_custom_call.1} parent=1 // pred_check_branch
      %140 = sbr.rel (0) target = $region69
    $region68: #{tpu_custom_call.1} parent=1 // pred_region
      %141 = dma.done [#allocation6], 3072
    $region69: #{tpu_custom_call.1} parent=1 // pred_fallthru
      _
    // Predicated region
    $region70: #{tpu_custom_call.1} parent=1 // pred_check
      _
    $region71: #{tpu_custom_call.1} parent=1 // pred_check_branch
      %143 = sbr.rel (0) target = $region73
    $region72: #{tpu_custom_call.1} parent=1 // pred_region
      %144 = dma.done [#allocation9], 3072
    $region73: #{tpu_custom_call.1} parent=1 // pred_fallthru
      _
    // Predicated region
    $region74: #{tpu_custom_call.1} parent=1 // pred_check
      _
    $region75: #{tpu_custom_call.1} parent=1 // pred_check_branch
      %146 = sbr.rel (0) target = $region77
    $region76: #{tpu_custom_call.1} parent=1 // pred_region
      %147 = dma.done [#allocation9], 512
    $region77: #{tpu_custom_call.1} parent=1 // pred_fallthru
      _
    // Predicated region
    $region78: #{tpu_custom_call.1} parent=1 // pred_check
      _
    $region79: #{tpu_custom_call.1} parent=1 // pred_check_branch
      %149 = sbr.rel (0) target = $region81
    $region80: #{tpu_custom_call.1} parent=1 // pred_region
      %150 = dma.done [#allocation12], 2048
    $region81: #{tpu_custom_call.1} parent=1 // pred_fallthru
      _
    // Predicated region
    $region82: #{tpu_custom_call.1} parent=1 // pred_check
      _
    $region83: #{tpu_custom_call.1} parent=1 // pred_check_branch
      %152 = sbr.rel (0) target = $region85
    $region84: #{tpu_custom_call.1} parent=1 // pred_region
      %153 = dma.done [#allocation12], 512
    $region85: #{tpu_custom_call.1} parent=1 // pred_fallthru
      _
    // Predicated region
    $region86: #{tpu_custom_call.1} parent=1 // pred_check
      _
    $region87: #{tpu_custom_call.1} parent=1 // pred_check_branch
      %155 = sbr.rel (0) target = $region89
    $region88: #{tpu_custom_call.1} parent=1 // pred_region
      %156 = dma.done [#allocation15], 512
    $region89: #{tpu_custom_call.1} parent=1 // pred_fallthru
      _
    %v158 = vld [vmem:[#allocation2] sm:$0xf]
    %v159 = vld [vmem:[#allocation2 + $0x4] sm:$0xf]
    %v160 = vld [vmem:[#allocation2 + $0x8] sm:$0xf]
    %v161 = vld [vmem:[#allocation2 + $0xc] sm:$0xf]
    %v162 = vld [vmem:[#allocation5] sm:$0xff]
    %v163 = vld [vmem:[#allocation5 + $0x8] sm:$0xf]
    %v164 = vld [vmem:[#allocation5 + $0xc] sm:$0xff]
    %v165 = vld [vmem:[#allocation5 + $0x14] sm:$0xf]
    %v166 = vld [vmem:[#allocation5 + $0x18] sm:$0xff]
    %v167 = vld [vmem:[#allocation5 + $0x20] sm:$0xf]
    %v168 = vld [vmem:[#allocation5 + $0x24] sm:$0xff]
    %v169 = vld [vmem:[#allocation5 + $0x2c] sm:$0xf]
    %v170 = vld [vmem:[#allocation5 + $0x30] sm:$0xff]
    %v171 = vld [vmem:[#allocation5 + $0x38] sm:$0xf]
    %v172 = vld [vmem:[#allocation5 + $0x3c] sm:$0xff]
    %v173 = vld [vmem:[#allocation5 + $0x44] sm:$0xf]
    %v174 = vld [vmem:[#allocation5 + $0x48] sm:$0xff]
    %v175 = vld [vmem:[#allocation5 + $0x50] sm:$0xf]
    %v176 = vld [vmem:[#allocation5 + $0x54] sm:$0xff]
    %v177 = vld [vmem:[#allocation5 + $0x5c] sm:$0xf]
    %v182 = vunpack.c.l.b16 %v158
    %v183 = vunpack.c.l.b16 %v159
    %v184 = vunpack.c.l.b16 %v160
    %v185 = vunpack.c.l.b16 %v161
    %v186 = vpack.c.b16 %v183, %v182
    %v187 = vpack.c.b16 %v185, %v184
    %v204 = vunpack.c.l.b16 %v162
    %v205 = vunpack.c.h.b16 %v162
    %v206 = vunpack.c.l.b16 %v163
    %v207 = vunpack.c.l.b16 %v164
    %v208 = vunpack.c.h.b16 %v164
    %v209 = vunpack.c.l.b16 %v165
    %v210 = vunpack.c.l.b16 %v166
    %v211 = vunpack.c.h.b16 %v166
    %v212 = vunpack.c.l.b16 %v167
    %v213 = vunpack.c.l.b16 %v168
    %v214 = vunpack.c.h.b16 %v168
    %v215 = vunpack.c.l.b16 %v169
    %v216 = vunpack.c.l.b16 %v170
    %v217 = vunpack.c.h.b16 %v170
    %v218 = vunpack.c.l.b16 %v171
    %v219 = vunpack.c.l.b16 %v172
    %v220 = vunpack.c.h.b16 %v172
    %v221 = vunpack.c.l.b16 %v173
    %v222 = vunpack.c.l.b16 %v174
    %v223 = vunpack.c.h.b16 %v174
    %v224 = vunpack.c.l.b16 %v175
    %v225 = vunpack.c.l.b16 %v176
    %v226 = vunpack.c.h.b16 %v176
    %v227 = vunpack.c.l.b16 %v177
    %v228 = vpack.c.b16 %v207, %v204
    %v229 = vpack.c.b16 %v208, %v205
    %v230 = vpack.c.b16 %v209, %v206
    %v231 = vpack.c.b16 %v213, %v210
    %v232 = vpack.c.b16 %v214, %v211
    %v233 = vpack.c.b16 %v215, %v212
    %v234 = vpack.c.b16 %v219, %v216
    %v235 = vpack.c.b16 %v220, %v217
    %v236 = vpack.c.b16 %v221, %v218
    %v237 = vpack.c.b16 %v225, %v222
    %v238 = vpack.c.b16 %v226, %v223
    %v239 = vpack.c.b16 %v227, %v224
    %vm252 = vcmask 523264
    %v254 = vsel %vm252, %v186, 0
    %v257 = vsel %vm252, %v187, 0
    %259 = vmatprep.subr.bf16.mxu0 0
    %260 = vmatpush1.bf16.msra.mxu0 0
    %261 = vmatprep.subr.bf16.mxu0 0
    %262 = vmatpush1.bf16.msra.mxu0 0
    %263 = vmatprep.subr.bf16.mxu0 0
    %264 = vmatpush1.bf16.msra.mxu0 0
    %265 = vmatprep.subr.bf16.mxu0 0
    %266 = vmatpush1.bf16.msra.mxu0 0
    %267 = vmatprep.subr.bf16.mxu0 %v238
    %268 = vmatpush1.bf16.msra.mxu0 %v237
    %269 = vmatprep.subr.bf16.mxu0 %v235
    %270 = vmatpush1.bf16.msra.mxu0 %v234
    %271 = vmatprep.subr.bf16.mxu0 %v232
    %272 = vmatpush1.bf16.msra.mxu0 %v231
    %273 = vmatprep.subr.bf16.mxu0 %v229
    %274 = vmatpush1.bf16.msra.mxu0 %v228
    %275 = vmatprep.subr.bf16.mxu0 0
    %276 = vmatpush2.bf16.msra.mxu0 0
    %277 = vmatprep.subr.bf16.mxu0 0
    %278 = vmatpush2.bf16.msra.mxu0 0
    %279 = vmatprep.subr.bf16.mxu0 0
    %280 = vmatpush2.bf16.msra.mxu0 0
    %281 = vmatprep.subr.bf16.mxu0 0
    %282 = vmatpush2.bf16.msra.mxu0 0
    %283 = vmatprep.subr.bf16.mxu0 0
    %284 = vmatpush2.bf16.msra.mxu0 0
    %285 = vmatprep.subr.bf16.mxu0 0
    %286 = vmatpush2.bf16.msra.mxu0 0
    %287 = vmatprep.subr.bf16.mxu0 0
    %288 = vmatpush2.bf16.msra.mxu0 0
    %289 = vmatprep.subr.bf16.mxu0 0
    %290 = vmatpush2.bf16.msra.mxu0 0
    %291 = vmatprep.mubr.bf16.mxu0 0
    %292 = vmatmul.mubr.bf16.gmra.mxu0 %v254
    %v293 = vpop.f32.mrf.mxu0
    %v294 = vadd.f32 0.0, %v293
    %v295 = vpop.f32.mrf.mxu0
    %v296 = vadd.f32 0.0, %v295
    %v297 = vpop.f32.mrf.mxu0
    %v298 = vadd.f32 0.0, %v297
    %v299 = vpop.f32.mrf.mxu0
    %v300 = vadd.f32 0.0, %v299
    %301 = vmatprep.mubr.bf16.mxu0 0
    %302 = vmatmul.mubr.bf16.gmra.mxu0 %v257
    %v303 = vpop.f32.mrf.mxu0
    %v304 = vadd.f32 0.0, %v303
    %v305 = vpop.f32.mrf.mxu0
    %v306 = vadd.f32 0.0, %v305
    %v307 = vpop.f32.mrf.mxu0
    %v308 = vadd.f32 0.0, %v307
    %v309 = vpop.f32.mrf.mxu0
    %v310 = vadd.f32 0.0, %v309
    %311 = vdwg.mxu0
    %312 = vmatprep.subr.bf16.mxu0 0
    %313 = vmatpush1.bf16.msra.mxu0 0
    %314 = vmatprep.subr.bf16.mxu0 0
    %315 = vmatpush1.bf16.msra.mxu0 0
    %316 = vmatprep.subr.bf16.mxu0 0
    %317 = vmatpush1.bf16.msra.mxu0 0
    %318 = vmatprep.subr.bf16.mxu0 0
    %319 = vmatpush1.bf16.msra.mxu0 0
    %320 = vmatprep.subr.bf16.mxu0 0
    %321 = vmatpush1.bf16.msra.mxu0 %v239
    %322 = vmatprep.subr.bf16.mxu0 0
    %323 = vmatpush1.bf16.msra.mxu0 %v236
    %324 = vmatprep.subr.bf16.mxu0 0
    %325 = vmatpush1.bf16.msra.mxu0 %v233
    %326 = vmatprep.subr.bf16.mxu0 0
    %327 = vmatpush1.bf16.msra.mxu0 %v230
    %328 = vmatprep.subr.bf16.mxu0 0
    %329 = vmatpush2.bf16.msra.mxu0 0
    %330 = vmatprep.subr.bf16.mxu0 0
    %331 = vmatpush2.bf16.msra.mxu0 0
    %332 = vmatprep.subr.bf16.mxu0 0
    %333 = vmatpush2.bf16.msra.mxu0 0
    %334 = vmatprep.subr.bf16.mxu0 0
    %335 = vmatpush2.bf16.msra.mxu0 0
    %336 = vmatprep.subr.bf16.mxu0 0
    %337 = vmatpush2.bf16.msra.mxu0 0
    %338 = vmatprep.subr.bf16.mxu0 0
    %339 = vmatpush2.bf16.msra.mxu0 0
    %340 = vmatprep.subr.bf16.mxu0 0
    %341 = vmatpush2.bf16.msra.mxu0 0
    %342 = vmatprep.subr.bf16.mxu0 0
    %343 = vmatpush2.bf16.msra.mxu0 0
    %344 = vmatprep.mubr.bf16.mxu0 0
    %345 = vmatmul.mubr.bf16.gmra.mxu0 %v254
    %v346 = vpop.f32.mrf.mxu0
    %v347 = vadd.f32 0.0, %v346
    %v348 = vpop.f32.mrf.mxu0
    %v349 = vpop.f32.mrf.mxu0
    %v350 = vadd.f32 0.0, %v349
    %v351 = vpop.f32.mrf.mxu0
    %352 = vmatprep.mubr.bf16.mxu0 0
    %353 = vmatmul.mubr.bf16.gmra.mxu0 %v257
    %v354 = vpop.f32.mrf.mxu0
    %v355 = vadd.f32 0.0, %v354
    %v356 = vpop.f32.mrf.mxu0
    %v357 = vpop.f32.mrf.mxu0
    %v358 = vadd.f32 0.0, %v357
    %v359 = vpop.f32.mrf.mxu0
    %360 = vdwg.mxu0
    %v361 = vld [vmem:[#allocation13] sm:$0xff]
    %v362 = vld [vmem:[#allocation13 + $0x8] sm:$0xff]
    %v363 = vld [vmem:[#allocation13 + $0x10] sm:$0xff]
    %v364 = vld [vmem:[#allocation13 + $0x18] sm:$0xff]
    %vm365 = vcmask 261120
    %v367 = vsel %vm365, %v361, 0
    %v370 = vsel %vm365, %v362, 0
    %v373 = vsel %vm365, %v363, 0
    %v376 = vsel %vm365, %v364, 0
    %378 = vmatprep.subr.mxu0 0.0
    %379 = vmatpush1.msra.mxu0 0.0
    %380 = vmatprep.subr.mxu0 0.0
    %381 = vmatpush1.msra.mxu0 0.0
    %382 = vmatprep.subr.mxu0 0.0
    %383 = vmatpush1.msra.mxu0 0.0
    %384 = vmatprep.subr.mxu0 0.0
    %385 = vmatpush1.msra.mxu0 0.0
    %386 = vmatprep.subr.mxu0 0.0
    %387 = vmatpush1.msra.mxu0 0.0
    %388 = vmatprep.subr.mxu0 0.0
    %389 = vmatpush1.msra.mxu0 0.0
    %390 = vmatprep.subr.mxu0 0.0
    %391 = vmatpush1.msra.mxu0 0.0
    %392 = vmatprep.subr.mxu0 0.0
    %393 = vmatpush1.msra.mxu0 0.0
    %394 = vmatprep.subr.mxu0 0.0
    %395 = vmatpush1.msra.mxu0 0.0
    %396 = vmatprep.subr.mxu0 0.0
    %397 = vmatpush1.msra.mxu0 0.0
    %398 = vmatprep.subr.mxu0 0.0
    %399 = vmatpush1.msra.mxu0 0.0
    %400 = vmatprep.subr.mxu0 0.0
    %401 = vmatpush1.msra.mxu0 0.0
    %402 = vmatprep.subr.mxu0 0.0
    %403 = vmatpush1.msra.mxu0 %v308
    %404 = vmatprep.subr.mxu0 0.0
    %405 = vmatpush1.msra.mxu0 %v304
    %406 = vmatprep.subr.mxu0 0.0
    %407 = vmatpush1.msra.mxu0 %v298
    %408 = vmatprep.subr.mxu0 0.0
    %409 = vmatpush1.msra.mxu0 %v294
    %410 = vmatprep.subr.mxu0 0.0
    %411 = vmatpush2.msra.mxu0 0.0
    %412 = vmatprep.subr.mxu0 0.0
    %413 = vmatpush2.msra.mxu0 0.0
    %414 = vmatprep.subr.mxu0 0.0
    %415 = vmatpush2.msra.mxu0 0.0
    %416 = vmatprep.subr.mxu0 0.0
    %417 = vmatpush2.msra.mxu0 0.0
    %418 = vmatprep.subr.mxu0 0.0
    %419 = vmatpush2.msra.mxu0 0.0
    %420 = vmatprep.subr.mxu0 0.0
    %421 = vmatpush2.msra.mxu0 0.0
    %422 = vmatprep.subr.mxu0 0.0
    %423 = vmatpush2.msra.mxu0 0.0
    %424 = vmatprep.subr.mxu0 0.0
    %425 = vmatpush2.msra.mxu0 0.0
    %426 = vmatprep.subr.mxu0 0.0
    %427 = vmatpush2.msra.mxu0 0.0
    %428 = vmatprep.subr.mxu0 0.0
    %429 = vmatpush2.msra.mxu0 0.0
    %430 = vmatprep.subr.mxu0 0.0
    %431 = vmatpush2.msra.mxu0 0.0
    %432 = vmatprep.subr.mxu0 0.0
    %433 = vmatpush2.msra.mxu0 0.0
    %434 = vmatprep.subr.mxu0 0.0
    %435 = vmatpush2.msra.mxu0 0.0
    %436 = vmatprep.subr.mxu0 0.0
    %437 = vmatpush2.msra.mxu0 0.0
    %438 = vmatprep.subr.mxu0 0.0
    %439 = vmatpush2.msra.mxu0 0.0
    %440 = vmatprep.subr.mxu0 0.0
    %441 = vmatpush2.msra.mxu0 0.0
    %442 = vmatprep.mubr.f32.mxu0 0.0
    %443 = vmatmul.mubr.f32.gmra.mxu0 %v367
    %v444 = vpop.f32.mrf.mxu0
    %v445 = vadd.f32 0.0, %v444
    %v446 = vpop.f32.mrf.mxu0
    %447 = vmatprep.mubr.f32.mxu0 0.0
    %448 = vmatmul.mubr.f32.gmra.mxu0 %v370
    %v449 = vpop.f32.mrf.mxu0
    %v450 = vadd.f32 0.0, %v449
    %v451 = vpop.f32.mrf.mxu0
    %452 = vmatprep.mubr.f32.mxu0 0.0
    %453 = vmatmul.mubr.f32.gmra.mxu0 %v373
    %v454 = vpop.f32.mrf.mxu0
    %v455 = vadd.f32 0.0, %v454
    %v456 = vpop.f32.mrf.mxu0
    %457 = vmatprep.mubr.f32.mxu0 0.0
    %458 = vmatmul.mubr.f32.gmra.mxu0 %v376
    %v459 = vpop.f32.mrf.mxu0
    %v460 = vadd.f32 0.0, %v459
    %v461 = vpop.f32.mrf.mxu0
    %462 = vdwg.mxu0
    %v463 = vadd.f32 %v296, %v445
    %v464 = vadd.f32 %v300, %v450
    %v465 = vadd.f32 %v306, %v455
    %v466 = vadd.f32 %v310, %v460
    %v467 = vld [vmem:[#allocation14] sm:$0xff]
    %v468 = vld [vmem:[#allocation14 + $0x8] sm:$0xff]
    %v469 = vld [vmem:[#allocation14 + $0x10] sm:$0xff]
    %v470 = vld [vmem:[#allocation14 + $0x18] sm:$0xff]
    %v472 = vsel %vm365, %v467, 0
    %v475 = vsel %vm365, %v468, 0
    %v478 = vsel %vm365, %v469, 0
    %v481 = vsel %vm365, %v470, 0
    %483 = vmatprep.subr.mxu0 0.0
    %484 = vmatpush1.msra.mxu0 0.0
    %485 = vmatprep.subr.mxu0 0.0
    %486 = vmatpush1.msra.mxu0 0.0
    %487 = vmatprep.subr.mxu0 0.0
    %488 = vmatpush1.msra.mxu0 0.0
    %489 = vmatprep.subr.mxu0 0.0
    %490 = vmatpush1.msra.mxu0 0.0
    %491 = vmatprep.subr.mxu0 0.0
    %492 = vmatpush1.msra.mxu0 0.0
    %493 = vmatprep.subr.mxu0 0.0
    %494 = vmatpush1.msra.mxu0 0.0
    %495 = vmatprep.subr.mxu0 0.0
    %496 = vmatpush1.msra.mxu0 0.0
    %497 = vmatprep.subr.mxu0 0.0
    %498 = vmatpush1.msra.mxu0 0.0
    %499 = vmatprep.subr.mxu0 0.0
    %500 = vmatpush1.msra.mxu0 0.0
    %501 = vmatprep.subr.mxu0 0.0
    %502 = vmatpush1.msra.mxu0 0.0
    %503 = vmatprep.subr.mxu0 0.0
    %504 = vmatpush1.msra.mxu0 0.0
    %505 = vmatprep.subr.mxu0 0.0
    %506 = vmatpush1.msra.mxu0 0.0
    %507 = vmatprep.subr.mxu0 0.0
    %508 = vmatpush1.msra.mxu0 %v358
    %509 = vmatprep.subr.mxu0 0.0
    %510 = vmatpush1.msra.mxu0 %v355
    %511 = vmatprep.subr.mxu0 0.0
    %512 = vmatpush1.msra.mxu0 %v350
    %513 = vmatprep.subr.mxu0 0.0
    %514 = vmatpush1.msra.mxu0 %v347
    %515 = vmatprep.subr.mxu0 0.0
    %516 = vmatpush2.msra.mxu0 0.0
    %517 = vmatprep.subr.mxu0 0.0
    %518 = vmatpush2.msra.mxu0 0.0
    %519 = vmatprep.subr.mxu0 0.0
    %520 = vmatpush2.msra.mxu0 0.0
    %521 = vmatprep.subr.mxu0 0.0
    %522 = vmatpush2.msra.mxu0 0.0
    %523 = vmatprep.subr.mxu0 0.0
    %524 = vmatpush2.msra.mxu0 0.0
    %525 = vmatprep.subr.mxu0 0.0
    %526 = vmatpush2.msra.mxu0 0.0
    %527 = vmatprep.subr.mxu0 0.0
    %528 = vmatpush2.msra.mxu0 0.0
    %529 = vmatprep.subr.mxu0 0.0
    %530 = vmatpush2.msra.mxu0 0.0
    %531 = vmatprep.subr.mxu0 0.0
    %532 = vmatpush2.msra.mxu0 0.0
    %533 = vmatprep.subr.mxu0 0.0
    %534 = vmatpush2.msra.mxu0 0.0
    %535 = vmatprep.subr.mxu0 0.0
    %536 = vmatpush2.msra.mxu0 0.0
    %537 = vmatprep.subr.mxu0 0.0
    %538 = vmatpush2.msra.mxu0 0.0
    %539 = vmatprep.subr.mxu0 0.0
    %540 = vmatpush2.msra.mxu0 0.0
    %541 = vmatprep.subr.mxu0 0.0
    %542 = vmatpush2.msra.mxu0 0.0
    %543 = vmatprep.subr.mxu0 0.0
    %544 = vmatpush2.msra.mxu0 0.0
    %545 = vmatprep.subr.mxu0 0.0
    %546 = vmatpush2.msra.mxu0 0.0
    %547 = vmatprep.mubr.f32.mxu0 0.0
    %548 = vmatmul.mubr.f32.gmra.mxu0 %v472
    %v549 = vpop.f32.mrf.mxu0
    %v550 = vadd.f32 0.0, %v549
    %v551 = vpop.f32.mrf.mxu0
    %552 = vmatprep.mubr.f32.mxu0 0.0
    %553 = vmatmul.mubr.f32.gmra.mxu0 %v475
    %v554 = vpop.f32.mrf.mxu0
    %v555 = vadd.f32 0.0, %v554
    %v556 = vpop.f32.mrf.mxu0
    %557 = vmatprep.mubr.f32.mxu0 0.0
    %558 = vmatmul.mubr.f32.gmra.mxu0 %v478
    %v559 = vpop.f32.mrf.mxu0
    %v560 = vadd.f32 0.0, %v559
    %v561 = vpop.f32.mrf.mxu0
    %562 = vmatprep.mubr.f32.mxu0 0.0
    %563 = vmatmul.mubr.f32.gmra.mxu0 %v481
    %v564 = vpop.f32.mrf.mxu0
    %v565 = vadd.f32 0.0, %v564
    %v566 = vpop.f32.mrf.mxu0
    %567 = vdwg.mxu0
    %v568 = vadd.f32 %v463, %v550
    %v569 = vadd.f32 %v464, %v555
    %v570 = vadd.f32 %v465, %v560
    %v571 = vadd.f32 %v466, %v565
    %v572 = vld [vmem:[#allocation11] sm:$0xff]
    %v573 = vld [vmem:[#allocation11 + $0x8] sm:$0xff]
    %v574 = vld [vmem:[#allocation11 + $0x10] sm:$0xff]
    %v575 = vld [vmem:[#allocation11 + $0x18] sm:$0xff]
    %v576 = vld [vmem:[#allocation11 + $0x20] sm:$0xff]
    %v577 = vld [vmem:[#allocation11 + $0x28] sm:$0xff]
    %v578 = vld [vmem:[#allocation11 + $0x30] sm:$0xff]
    %v579 = vld [vmem:[#allocation11 + $0x38] sm:$0xff]
    %v580 = vld [vmem:[#allocation11 + $0x40] sm:$0xff]
    %v581 = vld [vmem:[#allocation11 + $0x48] sm:$0xff]
    %v582 = vld [vmem:[#allocation11 + $0x50] sm:$0xff]
    %v583 = vld [vmem:[#allocation11 + $0x58] sm:$0xff]
    %v584 = vld [vmem:[#allocation11 + $0x60] sm:$0xff]
    %v585 = vld [vmem:[#allocation11 + $0x68] sm:$0xff]
    %v586 = vld [vmem:[#allocation11 + $0x70] sm:$0xff]
    %v587 = vld [vmem:[#allocation11 + $0x78] sm:$0xff]
    %v588 = vadd.f32 %v568, %v569
    %v589 = vadd.f32 %v588, %v570
    %v590 = vadd.f32 %v589, %v571
    %v591 = vrot.slane %v590, 4
    %v592 = vadd.f32 %v590, %v591
    %v593 = vrot.slane %v592, 2
    %v594 = vadd.f32 %v592, %v593
    %v595 = vrot.slane %v594, 1
    %v596 = vadd.f32 %v594, %v595
    %597 = vmatprep.subr.mxu0 0.0
    %598 = vmatpush1.msra.mxu0 %v587
    %599 = vmatprep.subr.mxu0 0.0
    %600 = vmatpush1.msra.mxu0 %v586
    %601 = vmatprep.subr.mxu0 0.0
    %602 = vmatpush1.msra.mxu0 %v585
    %603 = vmatprep.subr.mxu0 0.0
    %604 = vmatpush1.msra.mxu0 %v584
    %605 = vmatprep.subr.mxu0 0.0
    %606 = vmatpush1.msra.mxu0 %v583
    %607 = vmatprep.subr.mxu0 0.0
    %608 = vmatpush1.msra.mxu0 %v582
    %609 = vmatprep.subr.mxu0 0.0
    %610 = vmatpush1.msra.mxu0 %v581
    %611 = vmatprep.subr.mxu0 0.0
    %612 = vmatpush1.msra.mxu0 %v580
    %613 = vmatprep.subr.mxu0 0.0
    %614 = vmatpush1.msra.mxu0 %v579
    %615 = vmatprep.subr.mxu0 0.0
    %616 = vmatpush1.msra.mxu0 %v578
    %617 = vmatprep.subr.mxu0 0.0
    %618 = vmatpush1.msra.mxu0 %v577
    %619 = vmatprep.subr.mxu0 0.0
    %620 = vmatpush1.msra.mxu0 %v576
    %621 = vmatprep.subr.mxu0 0.0
    %622 = vmatpush1.msra.mxu0 %v575
    %623 = vmatprep.subr.mxu0 0.0
    %624 = vmatpush1.msra.mxu0 %v574
    %625 = vmatprep.subr.mxu0 0.0
    %626 = vmatpush1.msra.mxu0 %v573
    %627 = vmatprep.subr.mxu0 0.0
    %628 = vmatpush1.msra.mxu0 %v572
    %629 = vmatprep.subr.mxu0 0.0
    %630 = vmatpush2.msra.mxu0 0.0
    %631 = vmatprep.subr.mxu0 0.0
    %632 = vmatpush2.msra.mxu0 0.0
    %633 = vmatprep.subr.mxu0 0.0
    %634 = vmatpush2.msra.mxu0 0.0
    %635 = vmatprep.subr.mxu0 0.0
    %636 = vmatpush2.msra.mxu0 0.0
    %637 = vmatprep.subr.mxu0 0.0
    %638 = vmatpush2.msra.mxu0 0.0
    %639 = vmatprep.subr.mxu0 0.0
    %640 = vmatpush2.msra.mxu0 0.0
    %641 = vmatprep.subr.mxu0 0.0
    %642 = vmatpush2.msra.mxu0 0.0
    %643 = vmatprep.subr.mxu0 0.0
    %644 = vmatpush2.msra.mxu0 0.0
    %645 = vmatprep.subr.mxu0 0.0
    %646 = vmatpush2.msra.mxu0 0.0
    %647 = vmatprep.subr.mxu0 0.0
    %648 = vmatpush2.msra.mxu0 0.0
    %649 = vmatprep.subr.mxu0 0.0
    %650 = vmatpush2.msra.mxu0 0.0
    %651 = vmatprep.subr.mxu0 0.0
    %652 = vmatpush2.msra.mxu0 0.0
    %653 = vmatprep.subr.mxu0 0.0
    %654 = vmatpush2.msra.mxu0 0.0
    %655 = vmatprep.subr.mxu0 0.0
    %656 = vmatpush2.msra.mxu0 0.0
    %657 = vmatprep.subr.mxu0 0.0
    %658 = vmatpush2.msra.mxu0 0.0
    %659 = vmatprep.subr.mxu0 0.0
    %660 = vmatpush2.msra.mxu0 0.0
    %661 = vmatprep.mubr.f32.mxu0 0.0
    %662 = vmatmul.mubr.f32.gmra.mxu0 %v596
    %v663 = vpop.f32.mrf.mxu0
    %v664 = vadd.f32 0.0, %v663
    %v665 = vpop.f32.mrf.mxu0
    %666 = vdwg.mxu0
    %v667 = vlaneseq
    %v668 = vshrl.u32 %v667, 7
    %v669 = vsub.s32 0, %v668
    %v670 = vrot.slane %v664, %v669
    %v671 = vsub.f32 %v568, %v670
    %v672 = vsub.f32 %v569, %v670
    %v673 = vsub.f32 %v570, %v670
    %v674 = vsub.f32 %v571, %v670
    %v675 = vmul.f32 %v671, %v671
    %v676 = vmul.f32 %v672, %v672
    %v677 = vmul.f32 %v673, %v673
    %v678 = vmul.f32 %v674, %v674
    %v679 = vadd.f32 %v675, %v676
    %v680 = vadd.f32 %v679, %v677
    %v681 = vadd.f32 %v680, %v678
    %v682 = vrot.slane %v681, 4
    %v683 = vadd.f32 %v681, %v682
    %v684 = vrot.slane %v683, 2
    %v685 = vadd.f32 %v683, %v684
    %v686 = vrot.slane %v685, 1
    %v687 = vadd.f32 %v685, %v686
    %688 = vmatprep.subr.mxu0 0.0
    %689 = vmatpush1.msra.mxu0 %v587
    %690 = vmatprep.subr.mxu0 0.0
    %691 = vmatpush1.msra.mxu0 %v586
    %692 = vmatprep.subr.mxu0 0.0
    %693 = vmatpush1.msra.mxu0 %v585
    %694 = vmatprep.subr.mxu0 0.0
    %695 = vmatpush1.msra.mxu0 %v584
    %696 = vmatprep.subr.mxu0 0.0
    %697 = vmatpush1.msra.mxu0 %v583
    %698 = vmatprep.subr.mxu0 0.0
    %699 = vmatpush1.msra.mxu0 %v582
    %700 = vmatprep.subr.mxu0 0.0
    %701 = vmatpush1.msra.mxu0 %v581
    %702 = vmatprep.subr.mxu0 0.0
    %703 = vmatpush1.msra.mxu0 %v580
    %704 = vmatprep.subr.mxu0 0.0
    %705 = vmatpush1.msra.mxu0 %v579
    %706 = vmatprep.subr.mxu0 0.0
    %707 = vmatpush1.msra.mxu0 %v578
    %708 = vmatprep.subr.mxu0 0.0
    %709 = vmatpush1.msra.mxu0 %v577
    %710 = vmatprep.subr.mxu0 0.0
    %711 = vmatpush1.msra.mxu0 %v576
    %712 = vmatprep.subr.mxu0 0.0
    %713 = vmatpush1.msra.mxu0 %v575
    %714 = vmatprep.subr.mxu0 0.0
    %715 = vmatpush1.msra.mxu0 %v574
    %716 = vmatprep.subr.mxu0 0.0
    %717 = vmatpush1.msra.mxu0 %v573
    %718 = vmatprep.subr.mxu0 0.0
    %719 = vmatpush1.msra.mxu0 %v572
    %720 = vmatprep.subr.mxu0 0.0
    %721 = vmatpush2.msra.mxu0 0.0
    %722 = vmatprep.subr.mxu0 0.0
    %723 = vmatpush2.msra.mxu0 0.0
    %724 = vmatprep.subr.mxu0 0.0
    %725 = vmatpush2.msra.mxu0 0.0
    %726 = vmatprep.subr.mxu0 0.0
    %727 = vmatpush2.msra.mxu0 0.0
    %728 = vmatprep.subr.mxu0 0.0
    %729 = vmatpush2.msra.mxu0 0.0
    %730 = vmatprep.subr.mxu0 0.0
    %731 = vmatpush2.msra.mxu0 0.0
    %732 = vmatprep.subr.mxu0 0.0
    %733 = vmatpush2.msra.mxu0 0.0
    %734 = vmatprep.subr.mxu0 0.0
    %735 = vmatpush2.msra.mxu0 0.0
    %736 = vmatprep.subr.mxu0 0.0
    %737 = vmatpush2.msra.mxu0 0.0
    %738 = vmatprep.subr.mxu0 0.0
    %739 = vmatpush2.msra.mxu0 0.0
    %740 = vmatprep.subr.mxu0 0.0
    %741 = vmatpush2.msra.mxu0 0.0
    %742 = vmatprep.subr.mxu0 0.0
    %743 = vmatpush2.msra.mxu0 0.0
    %744 = vmatprep.subr.mxu0 0.0
    %745 = vmatpush2.msra.mxu0 0.0
    %746 = vmatprep.subr.mxu0 0.0
    %747 = vmatpush2.msra.mxu0 0.0
    %748 = vmatprep.subr.mxu0 0.0
    %749 = vmatpush2.msra.mxu0 0.0
    %750 = vmatprep.subr.mxu0 0.0
    %751 = vmatpush2.msra.mxu0 0.0
    %752 = vmatprep.mubr.f32.mxu0 0.0
    %753 = vmatmul.mubr.f32.gmra.mxu0 %v687
    %v754 = vpop.f32.mrf.mxu0
    %v755 = vadd.f32 1e-05, %v754
    %v756 = vpop.f32.mrf.mxu0
    %757 = vdwg.mxu0
    %v758 = vrsqrt.pop %v755
    %v759 = vld [vmem:[%s8] sm:$0x1]
    %v760 = vmul.f32 %v758, %v759
    %v761 = vlaneseq
    %v762 = vshrl.u32 %v761, 7
    %v763 = vsub.s32 0, %v762
    %v764 = vrot.slane %v760, %v763
    %v765 = vmul.f32 %v671, %v764
    %v766 = vmul.f32 %v672, %v764
    %v767 = vmul.f32 %v673, %v764
    %v768 = vmul.f32 %v674, %v764
    %v769 = vld [vmem:[%s9] sm:$0x1]
    %v771 = vlaneseq
    %v772 = vshrl.u32 %v771, 7
    %v773 = vsub.s32 0, %v772
    %v774 = vrot.slane %v769, %v773
    %v776 = vadd.f32 %v765, %v774
    %v777 = vadd.f32 %v766, %v774
    %v778 = vadd.f32 %v767, %v774
    %v779 = vadd.f32 %v768, %v774
    %v780 = vmax.f32 %v776, 0.0
    %v781 = vmax.f32 %v777, 0.0
    %v782 = vmax.f32 %v778, 0.0
    %v783 = vmax.f32 %v779, 0.0
    %v784 = vpack.c.bf16 %v781, %v780
    %v785 = vpack.c.bf16 %v783, %v782
    %v786 = vld [vmem:[#allocation7] sm:$0xff]
    %v787 = vld [vmem:[#allocation7 + $0x8] sm:$0xf]
    %v788 = vld [vmem:[#allocation7 + $0xc] sm:$0xff]
    %v789 = vld [vmem:[#allocation7 + $0x14] sm:$0xf]
    %v790 = vld [vmem:[#allocation7 + $0x18] sm:$0xff]
    %v791 = vld [vmem:[#allocation7 + $0x20] sm:$0xf]
    %v792 = vld [vmem:[#allocation7 + $0x24] sm:$0xff]
    %v793 = vld [vmem:[#allocation7 + $0x2c] sm:$0xf]
    %v794 = vld [vmem:[#allocation7 + $0x30] sm:$0xff]
    %v795 = vld [vmem:[#allocation7 + $0x38] sm:$0xf]
    %v796 = vld [vmem:[#allocation7 + $0x3c] sm:$0xff]
    %v797 = vld [vmem:[#allocation7 + $0x44] sm:$0xf]
    %v798 = vld [vmem:[#allocation7 + $0x48] sm:$0xff]
    %v799 = vld [vmem:[#allocation7 + $0x50] sm:$0xf]
    %v800 = vld [vmem:[#allocation7 + $0x54] sm:$0xff]
    %v801 = vld [vmem:[#allocation7 + $0x5c] sm:$0xf]
    %v802 = vld [vmem:[#allocation7 + $0x60] sm:$0xff]
    %v803 = vld [vmem:[#allocation7 + $0x68] sm:$0xf]
    %v804 = vld [vmem:[#allocation7 + $0x6c] sm:$0xff]
    %v805 = vld [vmem:[#allocation7 + $0x74] sm:$0xf]
    %v806 = vld [vmem:[#allocation7 + $0x78] sm:$0xff]
    %v807 = vld [vmem:[#allocation7 + $0x80] sm:$0xf]
    %v808 = vld [vmem:[#allocation7 + $0x84] sm:$0xff]
    %v809 = vld [vmem:[#allocation7 + $0x8c] sm:$0xf]
    %v810 = vld [vmem:[#allocation7 + $0x90] sm:$0xff]
    %v811 = vld [vmem:[#allocation7 + $0x98] sm:$0xf]
    %v812 = vld [vmem:[#allocation7 + $0x9c] sm:$0xff]
    %v813 = vld [vmem:[#allocation7 + $0xa4] sm:$0xf]
    %v814 = vld [vmem:[#allocation7 + $0xa8] sm:$0xff]
    %v815 = vld [vmem:[#allocation7 + $0xb0] sm:$0xf]
    %v816 = vld [vmem:[#allocation7 + $0xb4] sm:$0xff]
    %v817 = vld [vmem:[#allocation7 + $0xbc] sm:$0xf]
    %v850 = vunpack.c.l.b16 %v786
    %v851 = vunpack.c.h.b16 %v786
    %v852 = vunpack.c.l.b16 %v787
    %v853 = vunpack.c.l.b16 %v788
    %v854 = vunpack.c.h.b16 %v788
    %v855 = vunpack.c.l.b16 %v789
    %v856 = vunpack.c.l.b16 %v790
    %v857 = vunpack.c.h.b16 %v790
    %v858 = vunpack.c.l.b16 %v791
    %v859 = vunpack.c.l.b16 %v792
    %v860 = vunpack.c.h.b16 %v792
    %v861 = vunpack.c.l.b16 %v793
    %v862 = vunpack.c.l.b16 %v794
    %v863 = vunpack.c.h.b16 %v794
    %v864 = vunpack.c.l.b16 %v795
    %v865 = vunpack.c.l.b16 %v796
    %v866 = vunpack.c.h.b16 %v796
    %v867 = vunpack.c.l.b16 %v797
    %v868 = vunpack.c.l.b16 %v798
    %v869 = vunpack.c.h.b16 %v798
    %v870 = vunpack.c.l.b16 %v799
    %v871 = vunpack.c.l.b16 %v800
    %v872 = vunpack.c.h.b16 %v800
    %v873 = vunpack.c.l.b16 %v801
    %v874 = vunpack.c.l.b16 %v802
    %v875 = vunpack.c.h.b16 %v802
    %v876 = vunpack.c.l.b16 %v803
    %v877 = vunpack.c.l.b16 %v804
    %v878 = vunpack.c.h.b16 %v804
    %v879 = vunpack.c.l.b16 %v805
    %v880 = vunpack.c.l.b16 %v806
    %v881 = vunpack.c.h.b16 %v806
    %v882 = vunpack.c.l.b16 %v807
    %v883 = vunpack.c.l.b16 %v808
    %v884 = vunpack.c.h.b16 %v808
    %v885 = vunpack.c.l.b16 %v809
    %v886 = vunpack.c.l.b16 %v810
    %v887 = vunpack.c.h.b16 %v810
    %v888 = vunpack.c.l.b16 %v811
    %v889 = vunpack.c.l.b16 %v812
    %v890 = vunpack.c.h.b16 %v812
    %v891 = vunpack.c.l.b16 %v813
    %v892 = vunpack.c.l.b16 %v814
    %v893 = vunpack.c.h.b16 %v814
    %v894 = vunpack.c.l.b16 %v815
    %v895 = vunpack.c.l.b16 %v816
    %v896 = vunpack.c.h.b16 %v816
    %v897 = vunpack.c.l.b16 %v817
    %v898 = vpack.c.b16 %v853, %v850
    %v899 = vpack.c.b16 %v854, %v851
    %v900 = vpack.c.b16 %v855, %v852
    %v901 = vpack.c.b16 %v859, %v856
    %v902 = vpack.c.b16 %v860, %v857
    %v903 = vpack.c.b16 %v861, %v858
    %v904 = vpack.c.b16 %v865, %v862
    %v905 = vpack.c.b16 %v866, %v863
    %v906 = vpack.c.b16 %v867, %v864
    %v907 = vpack.c.b16 %v871, %v868
    %v908 = vpack.c.b16 %v872, %v869
    %v909 = vpack.c.b16 %v873, %v870
    %v910 = vpack.c.b16 %v877, %v874
    %v911 = vpack.c.b16 %v878, %v875
    %v912 = vpack.c.b16 %v879, %v876
    %v913 = vpack.c.b16 %v883, %v880
    %v914 = vpack.c.b16 %v884, %v881
    %v915 = vpack.c.b16 %v885, %v882
    %v916 = vpack.c.b16 %v889, %v886
    %v917 = vpack.c.b16 %v890, %v887
    %v918 = vpack.c.b16 %v891, %v888
    %v919 = vpack.c.b16 %v895, %v892
    %v920 = vpack.c.b16 %v896, %v893
    %v921 = vpack.c.b16 %v897, %v894
    %946 = vmatprep.subr.bf16.mxu0 %v920
    %947 = vmatpush1.bf16.msra.mxu0 %v919
    %948 = vmatprep.subr.bf16.mxu0 %v917
    %949 = vmatpush1.bf16.msra.mxu0 %v916
    %950 = vmatprep.subr.bf16.mxu0 %v914
    %951 = vmatpush1.bf16.msra.mxu0 %v913
    %952 = vmatprep.subr.bf16.mxu0 %v911
    %953 = vmatpush1.bf16.msra.mxu0 %v910
    %954 = vmatprep.subr.bf16.mxu0 %v908
    %955 = vmatpush1.bf16.msra.mxu0 %v907
    %956 = vmatprep.subr.bf16.mxu0 %v905
    %957 = vmatpush1.bf16.msra.mxu0 %v904
    %958 = vmatprep.subr.bf16.mxu0 %v902
    %959 = vmatpush1.bf16.msra.mxu0 %v901
    %960 = vmatprep.subr.bf16.mxu0 %v899
    %961 = vmatpush1.bf16.msra.mxu0 %v898
    %962 = vmatprep.subr.bf16.mxu0 0
    %963 = vmatpush2.bf16.msra.mxu0 0
    %964 = vmatprep.subr.bf16.mxu0 0
    %965 = vmatpush2.bf16.msra.mxu0 0
    %966 = vmatprep.subr.bf16.mxu0 0
    %967 = vmatpush2.bf16.msra.mxu0 0
    %968 = vmatprep.subr.bf16.mxu0 0
    %969 = vmatpush2.bf16.msra.mxu0 0
    %970 = vmatprep.subr.bf16.mxu0 0
    %971 = vmatpush2.bf16.msra.mxu0 0
    %972 = vmatprep.subr.bf16.mxu0 0
    %973 = vmatpush2.bf16.msra.mxu0 0
    %974 = vmatprep.subr.bf16.mxu0 0
    %975 = vmatpush2.bf16.msra.mxu0 0
    %976 = vmatprep.subr.bf16.mxu0 0
    %977 = vmatpush2.bf16.msra.mxu0 0
    %978 = vmatprep.mubr.bf16.mxu0 0
    %979 = vmatmul.mubr.bf16.gmra.mxu0 %v784
    %v980 = vpop.f32.mrf.mxu0
    %v981 = vadd.f32 0.0, %v980
    %v982 = vpop.f32.mrf.mxu0
    %v983 = vadd.f32 0.0, %v982
    %v984 = vpop.f32.mrf.mxu0
    %v985 = vadd.f32 0.0, %v984
    %v986 = vpop.f32.mrf.mxu0
    %v987 = vadd.f32 0.0, %v986
    %988 = vmatprep.mubr.bf16.mxu0 0
    %989 = vmatmul.mubr.bf16.gmra.mxu0 %v785
    %v990 = vpop.f32.mrf.mxu0
    %v991 = vadd.f32 0.0, %v990
    %v992 = vpop.f32.mrf.mxu0
    %v993 = vadd.f32 0.0, %v992
    %v994 = vpop.f32.mrf.mxu0
    %v995 = vadd.f32 0.0, %v994
    %v996 = vpop.f32.mrf.mxu0
    %v997 = vadd.f32 0.0, %v996
    %998 = vdwg.mxu0
    %999 = vmatprep.subr.bf16.mxu0 0
    %1000 = vmatpush1.bf16.msra.mxu0 %v921
    %1001 = vmatprep.subr.bf16.mxu0 0
    %1002 = vmatpush1.bf16.msra.mxu0 %v918
    %1003 = vmatprep.subr.bf16.mxu0 0
    %1004 = vmatpush1.bf16.msra.mxu0 %v915
    %1005 = vmatprep.subr.bf16.mxu0 0
    %1006 = vmatpush1.bf16.msra.mxu0 %v912
    %1007 = vmatprep.subr.bf16.mxu0 0
    %1008 = vmatpush1.bf16.msra.mxu0 %v909
    %1009 = vmatprep.subr.bf16.mxu0 0
    %1010 = vmatpush1.bf16.msra.mxu0 %v906
    %1011 = vmatprep.subr.bf16.mxu0 0
    %1012 = vmatpush1.bf16.msra.mxu0 %v903
    %1013 = vmatprep.subr.bf16.mxu0 0
    %1014 = vmatpush1.bf16.msra.mxu0 %v900
    %1015 = vmatprep.subr.bf16.mxu0 0
    %1016 = vmatpush2.bf16.msra.mxu0 0
    %1017 = vmatprep.subr.bf16.mxu0 0
    %1018 = vmatpush2.bf16.msra.mxu0 0
    %1019 = vmatprep.subr.bf16.mxu0 0
    %1020 = vmatpush2.bf16.msra.mxu0 0
    %1021 = vmatprep.subr.bf16.mxu0 0
    %1022 = vmatpush2.bf16.msra.mxu0 0
    %1023 = vmatprep.subr.bf16.mxu0 0
    %1024 = vmatpush2.bf16.msra.mxu0 0
    %1025 = vmatprep.subr.bf16.mxu0 0
    %1026 = vmatpush2.bf16.msra.mxu0 0
    %1027 = vmatprep.subr.bf16.mxu0 0
    %1028 = vmatpush2.bf16.msra.mxu0 0
    %1029 = vmatprep.subr.bf16.mxu0 0
    %1030 = vmatpush2.bf16.msra.mxu0 0
    %1031 = vmatprep.mubr.bf16.mxu0 0
    %1032 = vmatmul.mubr.bf16.gmra.mxu0 %v784
    %v1033 = vpop.f32.mrf.mxu0
    %v1034 = vadd.f32 0.0, %v1033
    %v1035 = vpop.f32.mrf.mxu0
    %v1036 = vpop.f32.mrf.mxu0
    %v1037 = vadd.f32 0.0, %v1036
    %v1038 = vpop.f32.mrf.mxu0
    %1039 = vmatprep.mubr.bf16.mxu0 0
    %1040 = vmatmul.mubr.bf16.gmra.mxu0 %v785
    %v1041 = vpop.f32.mrf.mxu0
    %v1042 = vadd.f32 0.0, %v1041
    %v1043 = vpop.f32.mrf.mxu0
    %v1044 = vpop.f32.mrf.mxu0
    %v1045 = vadd.f32 0.0, %v1044
    %v1046 = vpop.f32.mrf.mxu0
    %1047 = vdwg.mxu0
    %1048 = vmatprep.subr.mxu0 0.0
    %1049 = vmatpush1.msra.mxu0 0.0
    %1050 = vmatprep.subr.mxu0 0.0
    %1051 = vmatpush1.msra.mxu0 0.0
    %1052 = vmatprep.subr.mxu0 0.0
    %1053 = vmatpush1.msra.mxu0 0.0
    %1054 = vmatprep.subr.mxu0 0.0
    %1055 = vmatpush1.msra.mxu0 0.0
    %1056 = vmatprep.subr.mxu0 0.0
    %1057 = vmatpush1.msra.mxu0 0.0
    %1058 = vmatprep.subr.mxu0 0.0
    %1059 = vmatpush1.msra.mxu0 0.0
    %1060 = vmatprep.subr.mxu0 0.0
    %1061 = vmatpush1.msra.mxu0 0.0
    %1062 = vmatprep.subr.mxu0 0.0
    %1063 = vmatpush1.msra.mxu0 0.0
    %1064 = vmatprep.subr.mxu0 0.0
    %1065 = vmatpush1.msra.mxu0 0.0
    %1066 = vmatprep.subr.mxu0 0.0
    %1067 = vmatpush1.msra.mxu0 0.0
    %1068 = vmatprep.subr.mxu0 0.0
    %1069 = vmatpush1.msra.mxu0 0.0
    %1070 = vmatprep.subr.mxu0 0.0
    %1071 = vmatpush1.msra.mxu0 0.0
    %1072 = vmatprep.subr.mxu0 0.0
    %1073 = vmatpush1.msra.mxu0 %v995
    %1074 = vmatprep.subr.mxu0 0.0
    %1075 = vmatpush1.msra.mxu0 %v991
    %1076 = vmatprep.subr.mxu0 0.0
    %1077 = vmatpush1.msra.mxu0 %v985
    %1078 = vmatprep.subr.mxu0 0.0
    %1079 = vmatpush1.msra.mxu0 %v981
    %1080 = vmatprep.subr.mxu0 0.0
    %1081 = vmatpush2.msra.mxu0 0.0
    %1082 = vmatprep.subr.mxu0 0.0
    %1083 = vmatpush2.msra.mxu0 0.0
    %1084 = vmatprep.subr.mxu0 0.0
    %1085 = vmatpush2.msra.mxu0 0.0
    %1086 = vmatprep.subr.mxu0 0.0
    %1087 = vmatpush2.msra.mxu0 0.0
    %1088 = vmatprep.subr.mxu0 0.0
    %1089 = vmatpush2.msra.mxu0 0.0
    %1090 = vmatprep.subr.mxu0 0.0
    %1091 = vmatpush2.msra.mxu0 0.0
    %1092 = vmatprep.subr.mxu0 0.0
    %1093 = vmatpush2.msra.mxu0 0.0
    %1094 = vmatprep.subr.mxu0 0.0
    %1095 = vmatpush2.msra.mxu0 0.0
    %1096 = vmatprep.subr.mxu0 0.0
    %1097 = vmatpush2.msra.mxu0 0.0
    %1098 = vmatprep.subr.mxu0 0.0
    %1099 = vmatpush2.msra.mxu0 0.0
    %1100 = vmatprep.subr.mxu0 0.0
    %1101 = vmatpush2.msra.mxu0 0.0
    %1102 = vmatprep.subr.mxu0 0.0
    %1103 = vmatpush2.msra.mxu0 0.0
    %1104 = vmatprep.subr.mxu0 0.0
    %1105 = vmatpush2.msra.mxu0 0.0
    %1106 = vmatprep.subr.mxu0 0.0
    %1107 = vmatpush2.msra.mxu0 0.0
    %1108 = vmatprep.subr.mxu0 0.0
    %1109 = vmatpush2.msra.mxu0 0.0
    %1110 = vmatprep.subr.mxu0 0.0
    %1111 = vmatpush2.msra.mxu0 0.0
    %1112 = vmatprep.mubr.f32.mxu0 0.0
    %1113 = vmatmul.mubr.f32.gmra.mxu0 %v367
    %v1114 = vpop.f32.mrf.mxu0
    %v1115 = vadd.f32 0.0, %v1114
    %v1116 = vpop.f32.mrf.mxu0
    %1117 = vmatprep.mubr.f32.mxu0 0.0
    %1118 = vmatmul.mubr.f32.gmra.mxu0 %v370
    %v1119 = vpop.f32.mrf.mxu0
    %v1120 = vadd.f32 0.0, %v1119
    %v1121 = vpop.f32.mrf.mxu0
    %1122 = vmatprep.mubr.f32.mxu0 0.0
    %1123 = vmatmul.mubr.f32.gmra.mxu0 %v373
    %v1124 = vpop.f32.mrf.mxu0
    %v1125 = vadd.f32 0.0, %v1124
    %v1126 = vpop.f32.mrf.mxu0
    %1127 = vmatprep.mubr.f32.mxu0 0.0
    %1128 = vmatmul.mubr.f32.gmra.mxu0 %v376
    %v1129 = vpop.f32.mrf.mxu0
    %v1130 = vadd.f32 0.0, %v1129
    %v1131 = vpop.f32.mrf.mxu0
    %1132 = vdwg.mxu0
    %v1133 = vadd.f32 %v983, %v1115
    %v1134 = vadd.f32 %v987, %v1120
    %v1135 = vadd.f32 %v993, %v1125
    %v1136 = vadd.f32 %v997, %v1130
    %1137 = vmatprep.subr.mxu0 0.0
    %1138 = vmatpush1.msra.mxu0 0.0
    %1139 = vmatprep.subr.mxu0 0.0
    %1140 = vmatpush1.msra.mxu0 0.0
    %1141 = vmatprep.subr.mxu0 0.0
    %1142 = vmatpush1.msra.mxu0 0.0
    %1143 = vmatprep.subr.mxu0 0.0
    %1144 = vmatpush1.msra.mxu0 0.0
    %1145 = vmatprep.subr.mxu0 0.0
    %1146 = vmatpush1.msra.mxu0 0.0
    %1147 = vmatprep.subr.mxu0 0.0
    %1148 = vmatpush1.msra.mxu0 0.0
    %1149 = vmatprep.subr.mxu0 0.0
    %1150 = vmatpush1.msra.mxu0 0.0
    %1151 = vmatprep.subr.mxu0 0.0
    %1152 = vmatpush1.msra.mxu0 0.0
    %1153 = vmatprep.subr.mxu0 0.0
    %1154 = vmatpush1.msra.mxu0 0.0
    %1155 = vmatprep.subr.mxu0 0.0
    %1156 = vmatpush1.msra.mxu0 0.0
    %1157 = vmatprep.subr.mxu0 0.0
    %1158 = vmatpush1.msra.mxu0 0.0
    %1159 = vmatprep.subr.mxu0 0.0
    %1160 = vmatpush1.msra.mxu0 0.0
    %1161 = vmatprep.subr.mxu0 0.0
    %1162 = vmatpush1.msra.mxu0 %v1045
    %1163 = vmatprep.subr.mxu0 0.0
    %1164 = vmatpush1.msra.mxu0 %v1042
    %1165 = vmatprep.subr.mxu0 0.0
    %1166 = vmatpush1.msra.mxu0 %v1037
    %1167 = vmatprep.subr.mxu0 0.0
    %1168 = vmatpush1.msra.mxu0 %v1034
    %1169 = vmatprep.subr.mxu0 0.0
    %1170 = vmatpush2.msra.mxu0 0.0
    %1171 = vmatprep.subr.mxu0 0.0
    %1172 = vmatpush2.msra.mxu0 0.0
    %1173 = vmatprep.subr.mxu0 0.0
    %1174 = vmatpush2.msra.mxu0 0.0
    %1175 = vmatprep.subr.mxu0 0.0
    %1176 = vmatpush2.msra.mxu0 0.0
    %1177 = vmatprep.subr.mxu0 0.0
    %1178 = vmatpush2.msra.mxu0 0.0
    %1179 = vmatprep.subr.mxu0 0.0
    %1180 = vmatpush2.msra.mxu0 0.0
    %1181 = vmatprep.subr.mxu0 0.0
    %1182 = vmatpush2.msra.mxu0 0.0
    %1183 = vmatprep.subr.mxu0 0.0
    %1184 = vmatpush2.msra.mxu0 0.0
    %1185 = vmatprep.subr.mxu0 0.0
    %1186 = vmatpush2.msra.mxu0 0.0
    %1187 = vmatprep.subr.mxu0 0.0
    %1188 = vmatpush2.msra.mxu0 0.0
    %1189 = vmatprep.subr.mxu0 0.0
    %1190 = vmatpush2.msra.mxu0 0.0
    %1191 = vmatprep.subr.mxu0 0.0
    %1192 = vmatpush2.msra.mxu0 0.0
    %1193 = vmatprep.subr.mxu0 0.0
    %1194 = vmatpush2.msra.mxu0 0.0
    %1195 = vmatprep.subr.mxu0 0.0
    %1196 = vmatpush2.msra.mxu0 0.0
    %1197 = vmatprep.subr.mxu0 0.0
    %1198 = vmatpush2.msra.mxu0 0.0
    %1199 = vmatprep.subr.mxu0 0.0
    %1200 = vmatpush2.msra.mxu0 0.0
    %1201 = vmatprep.mubr.f32.mxu0 0.0
    %1202 = vmatmul.mubr.f32.gmra.mxu0 %v472
    %v1203 = vpop.f32.mrf.mxu0
    %v1204 = vadd.f32 0.0, %v1203
    %v1205 = vpop.f32.mrf.mxu0
    %1206 = vmatprep.mubr.f32.mxu0 0.0
    %1207 = vmatmul.mubr.f32.gmra.mxu0 %v475
    %v1208 = vpop.f32.mrf.mxu0
    %v1209 = vadd.f32 0.0, %v1208
    %v1210 = vpop.f32.mrf.mxu0
    %1211 = vmatprep.mubr.f32.mxu0 0.0
    %1212 = vmatmul.mubr.f32.gmra.mxu0 %v478
    %v1213 = vpop.f32.mrf.mxu0
    %v1214 = vadd.f32 0.0, %v1213
    %v1215 = vpop.f32.mrf.mxu0
    %1216 = vmatprep.mubr.f32.mxu0 0.0
    %1217 = vmatmul.mubr.f32.gmra.mxu0 %v481
    %v1218 = vpop.f32.mrf.mxu0
    %v1219 = vadd.f32 0.0, %v1218
    %v1220 = vpop.f32.mrf.mxu0
    %1221 = vdwg.mxu0
    %v1222 = vadd.f32 %v1133, %v1204
    %v1223 = vadd.f32 %v1134, %v1209
    %v1224 = vadd.f32 %v1135, %v1214
    %v1225 = vadd.f32 %v1136, %v1219
    %v1226 = vadd.f32 %v1222, %v1223
    %v1227 = vadd.f32 %v1226, %v1224
    %v1228 = vadd.f32 %v1227, %v1225
    %v1229 = vrot.slane %v1228, 4
    %v1230 = vadd.f32 %v1228, %v1229
    %v1231 = vrot.slane %v1230, 2
    %v1232 = vadd.f32 %v1230, %v1231
    %v1233 = vrot.slane %v1232, 1
    %v1234 = vadd.f32 %v1232, %v1233
    %1235 = vmatprep.subr.mxu0 0.0
    %1236 = vmatpush1.msra.mxu0 %v587
    %1237 = vmatprep.subr.mxu0 0.0
    %1238 = vmatpush1.msra.mxu0 %v586
    %1239 = vmatprep.subr.mxu0 0.0
    %1240 = vmatpush1.msra.mxu0 %v585
    %1241 = vmatprep.subr.mxu0 0.0
    %1242 = vmatpush1.msra.mxu0 %v584
    %1243 = vmatprep.subr.mxu0 0.0
    %1244 = vmatpush1.msra.mxu0 %v583
    %1245 = vmatprep.subr.mxu0 0.0
    %1246 = vmatpush1.msra.mxu0 %v582
    %1247 = vmatprep.subr.mxu0 0.0
    %1248 = vmatpush1.msra.mxu0 %v581
    %1249 = vmatprep.subr.mxu0 0.0
    %1250 = vmatpush1.msra.mxu0 %v580
    %1251 = vmatprep.subr.mxu0 0.0
    %1252 = vmatpush1.msra.mxu0 %v579
    %1253 = vmatprep.subr.mxu0 0.0
    %1254 = vmatpush1.msra.mxu0 %v578
    %1255 = vmatprep.subr.mxu0 0.0
    %1256 = vmatpush1.msra.mxu0 %v577
    %1257 = vmatprep.subr.mxu0 0.0
    %1258 = vmatpush1.msra.mxu0 %v576
    %1259 = vmatprep.subr.mxu0 0.0
    %1260 = vmatpush1.msra.mxu0 %v575
    %1261 = vmatprep.subr.mxu0 0.0
    %1262 = vmatpush1.msra.mxu0 %v574
    %1263 = vmatprep.subr.mxu0 0.0
    %1264 = vmatpush1.msra.mxu0 %v573
    %1265 = vmatprep.subr.mxu0 0.0
    %1266 = vmatpush1.msra.mxu0 %v572
    %1267 = vmatprep.subr.mxu0 0.0
    %1268 = vmatpush2.msra.mxu0 0.0
    %1269 = vmatprep.subr.mxu0 0.0
    %1270 = vmatpush2.msra.mxu0 0.0
    %1271 = vmatprep.subr.mxu0 0.0
    %1272 = vmatpush2.msra.mxu0 0.0
    %1273 = vmatprep.subr.mxu0 0.0
    %1274 = vmatpush2.msra.mxu0 0.0
    %1275 = vmatprep.subr.mxu0 0.0
    %1276 = vmatpush2.msra.mxu0 0.0
    %1277 = vmatprep.subr.mxu0 0.0
    %1278 = vmatpush2.msra.mxu0 0.0
    %1279 = vmatprep.subr.mxu0 0.0
    %1280 = vmatpush2.msra.mxu0 0.0
    %1281 = vmatprep.subr.mxu0 0.0
    %1282 = vmatpush2.msra.mxu0 0.0
    %1283 = vmatprep.subr.mxu0 0.0
    %1284 = vmatpush2.msra.mxu0 0.0
    %1285 = vmatprep.subr.mxu0 0.0
    %1286 = vmatpush2.msra.mxu0 0.0
    %1287 = vmatprep.subr.mxu0 0.0
    %1288 = vmatpush2.msra.mxu0 0.0
    %1289 = vmatprep.subr.mxu0 0.0
    %1290 = vmatpush2.msra.mxu0 0.0
    %1291 = vmatprep.subr.mxu0 0.0
    %1292 = vmatpush2.msra.mxu0 0.0
    %1293 = vmatprep.subr.mxu0 0.0
    %1294 = vmatpush2.msra.mxu0 0.0
    %1295 = vmatprep.subr.mxu0 0.0
    %1296 = vmatpush2.msra.mxu0 0.0
    %1297 = vmatprep.subr.mxu0 0.0
    %1298 = vmatpush2.msra.mxu0 0.0
    %1299 = vmatprep.mubr.f32.mxu0 0.0
    %1300 = vmatmul.mubr.f32.gmra.mxu0 %v1234
    %v1301 = vpop.f32.mrf.mxu0
    %v1302 = vadd.f32 0.0, %v1301
    %v1303 = vpop.f32.mrf.mxu0
    %1304 = vdwg.mxu0
    %v1305 = vlaneseq
    %v1306 = vshrl.u32 %v1305, 7
    %v1307 = vsub.s32 0, %v1306
    %v1308 = vrot.slane %v1302, %v1307
    %v1309 = vsub.f32 %v1222, %v1308
    %v1310 = vsub.f32 %v1223, %v1308
    %v1311 = vsub.f32 %v1224, %v1308
    %v1312 = vsub.f32 %v1225, %v1308
    %v1313 = vmul.f32 %v1309, %v1309
    %v1314 = vmul.f32 %v1310, %v1310
    %v1315 = vmul.f32 %v1311, %v1311
    %v1316 = vmul.f32 %v1312, %v1312
    %v1317 = vadd.f32 %v1313, %v1314
    %v1318 = vadd.f32 %v1317, %v1315
    %v1319 = vadd.f32 %v1318, %v1316
    %v1320 = vrot.slane %v1319, 4
    %v1321 = vadd.f32 %v1319, %v1320
    %v1322 = vrot.slane %v1321, 2
    %v1323 = vadd.f32 %v1321, %v1322
    %v1324 = vrot.slane %v1323, 1
    %v1325 = vadd.f32 %v1323, %v1324
    %1326 = vmatprep.subr.mxu0 0.0
    %1327 = vmatpush1.msra.mxu0 %v587
    %1328 = vmatprep.subr.mxu0 0.0
    %1329 = vmatpush1.msra.mxu0 %v586
    %1330 = vmatprep.subr.mxu0 0.0
    %1331 = vmatpush1.msra.mxu0 %v585
    %1332 = vmatprep.subr.mxu0 0.0
    %1333 = vmatpush1.msra.mxu0 %v584
    %1334 = vmatprep.subr.mxu0 0.0
    %1335 = vmatpush1.msra.mxu0 %v583
    %1336 = vmatprep.subr.mxu0 0.0
    %1337 = vmatpush1.msra.mxu0 %v582
    %1338 = vmatprep.subr.mxu0 0.0
    %1339 = vmatpush1.msra.mxu0 %v581
    %1340 = vmatprep.subr.mxu0 0.0
    %1341 = vmatpush1.msra.mxu0 %v580
    %1342 = vmatprep.subr.mxu0 0.0
    %1343 = vmatpush1.msra.mxu0 %v579
    %1344 = vmatprep.subr.mxu0 0.0
    %1345 = vmatpush1.msra.mxu0 %v578
    %1346 = vmatprep.subr.mxu0 0.0
    %1347 = vmatpush1.msra.mxu0 %v577
    %1348 = vmatprep.subr.mxu0 0.0
    %1349 = vmatpush1.msra.mxu0 %v576
    %1350 = vmatprep.subr.mxu0 0.0
    %1351 = vmatpush1.msra.mxu0 %v575
    %1352 = vmatprep.subr.mxu0 0.0
    %1353 = vmatpush1.msra.mxu0 %v574
    %1354 = vmatprep.subr.mxu0 0.0
    %1355 = vmatpush1.msra.mxu0 %v573
    %1356 = vmatprep.subr.mxu0 0.0
    %1357 = vmatpush1.msra.mxu0 %v572
    %1358 = vmatprep.subr.mxu0 0.0
    %1359 = vmatpush2.msra.mxu0 0.0
    %1360 = vmatprep.subr.mxu0 0.0
    %1361 = vmatpush2.msra.mxu0 0.0
    %1362 = vmatprep.subr.mxu0 0.0
    %1363 = vmatpush2.msra.mxu0 0.0
    %1364 = vmatprep.subr.mxu0 0.0
    %1365 = vmatpush2.msra.mxu0 0.0
    %1366 = vmatprep.subr.mxu0 0.0
    %1367 = vmatpush2.msra.mxu0 0.0
    %1368 = vmatprep.subr.mxu0 0.0
    %1369 = vmatpush2.msra.mxu0 0.0
    %1370 = vmatprep.subr.mxu0 0.0
    %1371 = vmatpush2.msra.mxu0 0.0
    %1372 = vmatprep.subr.mxu0 0.0
    %1373 = vmatpush2.msra.mxu0 0.0
    %1374 = vmatprep.subr.mxu0 0.0
    %1375 = vmatpush2.msra.mxu0 0.0
    %1376 = vmatprep.subr.mxu0 0.0
    %1377 = vmatpush2.msra.mxu0 0.0
    %1378 = vmatprep.subr.mxu0 0.0
    %1379 = vmatpush2.msra.mxu0 0.0
    %1380 = vmatprep.subr.mxu0 0.0
    %1381 = vmatpush2.msra.mxu0 0.0
    %1382 = vmatprep.subr.mxu0 0.0
    %1383 = vmatpush2.msra.mxu0 0.0
    %1384 = vmatprep.subr.mxu0 0.0
    %1385 = vmatpush2.msra.mxu0 0.0
    %1386 = vmatprep.subr.mxu0 0.0
    %1387 = vmatpush2.msra.mxu0 0.0
    %1388 = vmatprep.subr.mxu0 0.0
    %1389 = vmatpush2.msra.mxu0 0.0
    %1390 = vmatprep.mubr.f32.mxu0 0.0
    %1391 = vmatmul.mubr.f32.gmra.mxu0 %v1325
    %v1392 = vpop.f32.mrf.mxu0
    %v1393 = vadd.f32 1e-05, %v1392
    %v1394 = vpop.f32.mrf.mxu0
    %1395 = vdwg.mxu0
    %v1396 = vrsqrt.pop %v1393
    %v1397 = vld [vmem:[%s10] sm:$0x1]
    %v1398 = vmul.f32 %v1396, %v1397
    %v1399 = vlaneseq
    %v1400 = vshrl.u32 %v1399, 7
    %v1401 = vsub.s32 0, %v1400
    %v1402 = vrot.slane %v1398, %v1401
    %v1403 = vmul.f32 %v1309, %v1402
    %v1404 = vmul.f32 %v1310, %v1402
    %v1405 = vmul.f32 %v1311, %v1402
    %v1406 = vmul.f32 %v1312, %v1402
    %v1407 = vld [vmem:[%s11] sm:$0x1]
    %v1409 = vlaneseq
    %v1410 = vshrl.u32 %v1409, 7
    %v1411 = vsub.s32 0, %v1410
    %v1412 = vrot.slane %v1407, %v1411
    %v1414 = vadd.f32 %v1403, %v1412
    %v1415 = vadd.f32 %v1404, %v1412
    %v1416 = vadd.f32 %v1405, %v1412
    %v1417 = vadd.f32 %v1406, %v1412
    %v1418 = vmax.f32 %v1414, 0.0
    %v1419 = vmax.f32 %v1415, 0.0
    %v1420 = vmax.f32 %v1416, 0.0
    %v1421 = vmax.f32 %v1417, 0.0
    %v1422 = vpack.c.bf16 %v1419, %v1418
    %v1423 = vpack.c.bf16 %v1421, %v1420
    %v1424 = vld [vmem:[#allocation8] sm:$0xff]
    %v1425 = vld [vmem:[#allocation8 + $0x8] sm:$0xf]
    %v1426 = vld [vmem:[#allocation8 + $0xc] sm:$0xff]
    %v1427 = vld [vmem:[#allocation8 + $0x14] sm:$0xf]
    %v1428 = vld [vmem:[#allocation8 + $0x18] sm:$0xff]
    %v1429 = vld [vmem:[#allocation8 + $0x20] sm:$0xf]
    %v1430 = vld [vmem:[#allocation8 + $0x24] sm:$0xff]
    %v1431 = vld [vmem:[#allocation8 + $0x2c] sm:$0xf]
    %v1432 = vld [vmem:[#allocation8 + $0x30] sm:$0xff]
    %v1433 = vld [vmem:[#allocation8 + $0x38] sm:$0xf]
    %v1434 = vld [vmem:[#allocation8 + $0x3c] sm:$0xff]
    %v1435 = vld [vmem:[#allocation8 + $0x44] sm:$0xf]
    %v1436 = vld [vmem:[#allocation8 + $0x48] sm:$0xff]
    %v1437 = vld [vmem:[#allocation8 + $0x50] sm:$0xf]
    %v1438 = vld [vmem:[#allocation8 + $0x54] sm:$0xff]
    %v1439 = vld [vmem:[#allocation8 + $0x5c] sm:$0xf]
    %v1440 = vld [vmem:[#allocation8 + $0x60] sm:$0xff]
    %v1441 = vld [vmem:[#allocation8 + $0x68] sm:$0xf]
    %v1442 = vld [vmem:[#allocation8 + $0x6c] sm:$0xff]
    %v1443 = vld [vmem:[#allocation8 + $0x74] sm:$0xf]
    %v1444 = vld [vmem:[#allocation8 + $0x78] sm:$0xff]
    %v1445 = vld [vmem:[#allocation8 + $0x80] sm:$0xf]
    %v1446 = vld [vmem:[#allocation8 + $0x84] sm:$0xff]
    %v1447 = vld [vmem:[#allocation8 + $0x8c] sm:$0xf]
    %v1448 = vld [vmem:[#allocation8 + $0x90] sm:$0xff]
    %v1449 = vld [vmem:[#allocation8 + $0x98] sm:$0xf]
    %v1450 = vld [vmem:[#allocation8 + $0x9c] sm:$0xff]
    %v1451 = vld [vmem:[#allocation8 + $0xa4] sm:$0xf]
    %v1452 = vld [vmem:[#allocation8 + $0xa8] sm:$0xff]
    %v1453 = vld [vmem:[#allocation8 + $0xb0] sm:$0xf]
    %v1454 = vld [vmem:[#allocation8 + $0xb4] sm:$0xff]
    %v1455 = vld [vmem:[#allocation8 + $0xbc] sm:$0xf]
    %v1488 = vunpack.c.l.b16 %v1424
    %v1489 = vunpack.c.h.b16 %v1424
    %v1490 = vunpack.c.l.b16 %v1425
    %v1491 = vunpack.c.l.b16 %v1426
    %v1492 = vunpack.c.h.b16 %v1426
    %v1493 = vunpack.c.l.b16 %v1427
    %v1494 = vunpack.c.l.b16 %v1428
    %v1495 = vunpack.c.h.b16 %v1428
    %v1496 = vunpack.c.l.b16 %v1429
    %v1497 = vunpack.c.l.b16 %v1430
    %v1498 = vunpack.c.h.b16 %v1430
    %v1499 = vunpack.c.l.b16 %v1431
    %v1500 = vunpack.c.l.b16 %v1432
    %v1501 = vunpack.c.h.b16 %v1432
    %v1502 = vunpack.c.l.b16 %v1433
    %v1503 = vunpack.c.l.b16 %v1434
    %v1504 = vunpack.c.h.b16 %v1434
    %v1505 = vunpack.c.l.b16 %v1435
    %v1506 = vunpack.c.l.b16 %v1436
    %v1507 = vunpack.c.h.b16 %v1436
    %v1508 = vunpack.c.l.b16 %v1437
    %v1509 = vunpack.c.l.b16 %v1438
    %v1510 = vunpack.c.h.b16 %v1438
    %v1511 = vunpack.c.l.b16 %v1439
    %v1512 = vunpack.c.l.b16 %v1440
    %v1513 = vunpack.c.h.b16 %v1440
    %v1514 = vunpack.c.l.b16 %v1441
    %v1515 = vunpack.c.l.b16 %v1442
    %v1516 = vunpack.c.h.b16 %v1442
    %v1517 = vunpack.c.l.b16 %v1443
    %v1518 = vunpack.c.l.b16 %v1444
    %v1519 = vunpack.c.h.b16 %v1444
    %v1520 = vunpack.c.l.b16 %v1445
    %v1521 = vunpack.c.l.b16 %v1446
    %v1522 = vunpack.c.h.b16 %v1446
    %v1523 = vunpack.c.l.b16 %v1447
    %v1524 = vunpack.c.l.b16 %v1448
    %v1525 = vunpack.c.h.b16 %v1448
    %v1526 = vunpack.c.l.b16 %v1449
    %v1527 = vunpack.c.l.b16 %v1450
    %v1528 = vunpack.c.h.b16 %v1450
    %v1529 = vunpack.c.l.b16 %v1451
    %v1530 = vunpack.c.l.b16 %v1452
    %v1531 = vunpack.c.h.b16 %v1452
    %v1532 = vunpack.c.l.b16 %v1453
    %v1533 = vunpack.c.l.b16 %v1454
    %v1534 = vunpack.c.h.b16 %v1454
    %v1535 = vunpack.c.l.b16 %v1455
    %v1536 = vpack.c.b16 %v1491, %v1488
    %v1537 = vpack.c.b16 %v1492, %v1489
    %v1538 = vpack.c.b16 %v1493, %v1490
    %v1539 = vpack.c.b16 %v1497, %v1494
    %v1540 = vpack.c.b16 %v1498, %v1495
    %v1541 = vpack.c.b16 %v1499, %v1496
    %v1542 = vpack.c.b16 %v1503, %v1500
    %v1543 = vpack.c.b16 %v1504, %v1501
    %v1544 = vpack.c.b16 %v1505, %v1502
    %v1545 = vpack.c.b16 %v1509, %v1506
    %v1546 = vpack.c.b16 %v1510, %v1507
    %v1547 = vpack.c.b16 %v1511, %v1508
    %v1548 = vpack.c.b16 %v1515, %v1512
    %v1549 = vpack.c.b16 %v1516, %v1513
    %v1550 = vpack.c.b16 %v1517, %v1514
    %v1551 = vpack.c.b16 %v1521, %v1518
    %v1552 = vpack.c.b16 %v1522, %v1519
    %v1553 = vpack.c.b16 %v1523, %v1520
    %v1554 = vpack.c.b16 %v1527, %v1524
    %v1555 = vpack.c.b16 %v1528, %v1525
    %v1556 = vpack.c.b16 %v1529, %v1526
    %v1557 = vpack.c.b16 %v1533, %v1530
    %v1558 = vpack.c.b16 %v1534, %v1531
    %v1559 = vpack.c.b16 %v1535, %v1532
    %1584 = vmatprep.subr.bf16.mxu0 %v1558
    %1585 = vmatpush1.bf16.msra.mxu0 %v1557
    %1586 = vmatprep.subr.bf16.mxu0 %v1555
    %1587 = vmatpush1.bf16.msra.mxu0 %v1554
    %1588 = vmatprep.subr.bf16.mxu0 %v1552
    %1589 = vmatpush1.bf16.msra.mxu0 %v1551
    %1590 = vmatprep.subr.bf16.mxu0 %v1549
    %1591 = vmatpush1.bf16.msra.mxu0 %v1548
    %1592 = vmatprep.subr.bf16.mxu0 %v1546
    %1593 = vmatpush1.bf16.msra.mxu0 %v1545
    %1594 = vmatprep.subr.bf16.mxu0 %v1543
    %1595 = vmatpush1.bf16.msra.mxu0 %v1542
    %1596 = vmatprep.subr.bf16.mxu0 %v1540
    %1597 = vmatpush1.bf16.msra.mxu0 %v1539
    %1598 = vmatprep.subr.bf16.mxu0 %v1537
    %1599 = vmatpush1.bf16.msra.mxu0 %v1536
    %1600 = vmatprep.subr.bf16.mxu0 0
    %1601 = vmatpush2.bf16.msra.mxu0 0
    %1602 = vmatprep.subr.bf16.mxu0 0
    %1603 = vmatpush2.bf16.msra.mxu0 0
    %1604 = vmatprep.subr.bf16.mxu0 0
    %1605 = vmatpush2.bf16.msra.mxu0 0
    %1606 = vmatprep.subr.bf16.mxu0 0
    %1607 = vmatpush2.bf16.msra.mxu0 0
    %1608 = vmatprep.subr.bf16.mxu0 0
    %1609 = vmatpush2.bf16.msra.mxu0 0
    %1610 = vmatprep.subr.bf16.mxu0 0
    %1611 = vmatpush2.bf16.msra.mxu0 0
    %1612 = vmatprep.subr.bf16.mxu0 0
    %1613 = vmatpush2.bf16.msra.mxu0 0
    %1614 = vmatprep.subr.bf16.mxu0 0
    %1615 = vmatpush2.bf16.msra.mxu0 0
    %1616 = vmatprep.mubr.bf16.mxu0 0
    %1617 = vmatmul.mubr.bf16.gmra.mxu0 %v1422
    %v1618 = vpop.f32.mrf.mxu0
    %v1619 = vadd.f32 0.0, %v1618
    %v1620 = vpop.f32.mrf.mxu0
    %v1621 = vadd.f32 0.0, %v1620
    %v1622 = vpop.f32.mrf.mxu0
    %v1623 = vadd.f32 0.0, %v1622
    %v1624 = vpop.f32.mrf.mxu0
    %v1625 = vadd.f32 0.0, %v1624
    %1626 = vmatprep.mubr.bf16.mxu0 0
    %1627 = vmatmul.mubr.bf16.gmra.mxu0 %v1423
    %v1628 = vpop.f32.mrf.mxu0
    %v1629 = vadd.f32 0.0, %v1628
    %v1630 = vpop.f32.mrf.mxu0
    %v1631 = vadd.f32 0.0, %v1630
    %v1632 = vpop.f32.mrf.mxu0
    %v1633 = vadd.f32 0.0, %v1632
    %v1634 = vpop.f32.mrf.mxu0
    %v1635 = vadd.f32 0.0, %v1634
    %1636 = vdwg.mxu0
    %1637 = vmatprep.subr.bf16.mxu0 0
    %1638 = vmatpush1.bf16.msra.mxu0 %v1559
    %1639 = vmatprep.subr.bf16.mxu0 0
    %1640 = vmatpush1.bf16.msra.mxu0 %v1556
    %1641 = vmatprep.subr.bf16.mxu0 0
    %1642 = vmatpush1.bf16.msra.mxu0 %v1553
    %1643 = vmatprep.subr.bf16.mxu0 0
    %1644 = vmatpush1.bf16.msra.mxu0 %v1550
    %1645 = vmatprep.subr.bf16.mxu0 0
    %1646 = vmatpush1.bf16.msra.mxu0 %v1547
    %1647 = vmatprep.subr.bf16.mxu0 0
    %1648 = vmatpush1.bf16.msra.mxu0 %v1544
    %1649 = vmatprep.subr.bf16.mxu0 0
    %1650 = vmatpush1.bf16.msra.mxu0 %v1541
    %1651 = vmatprep.subr.bf16.mxu0 0
    %1652 = vmatpush1.bf16.msra.mxu0 %v1538
    %1653 = vmatprep.subr.bf16.mxu0 0
    %1654 = vmatpush2.bf16.msra.mxu0 0
    %1655 = vmatprep.subr.bf16.mxu0 0
    %1656 = vmatpush2.bf16.msra.mxu0 0
    %1657 = vmatprep.subr.bf16.mxu0 0
    %1658 = vmatpush2.bf16.msra.mxu0 0
    %1659 = vmatprep.subr.bf16.mxu0 0
    %1660 = vmatpush2.bf16.msra.mxu0 0
    %1661 = vmatprep.subr.bf16.mxu0 0
    %1662 = vmatpush2.bf16.msra.mxu0 0
    %1663 = vmatprep.subr.bf16.mxu0 0
    %1664 = vmatpush2.bf16.msra.mxu0 0
    %1665 = vmatprep.subr.bf16.mxu0 0
    %1666 = vmatpush2.bf16.msra.mxu0 0
    %1667 = vmatprep.subr.bf16.mxu0 0
    %1668 = vmatpush2.bf16.msra.mxu0 0
    %1669 = vmatprep.mubr.bf16.mxu0 0
    %1670 = vmatmul.mubr.bf16.gmra.mxu0 %v1422
    %v1671 = vpop.f32.mrf.mxu0
    %v1672 = vadd.f32 0.0, %v1671
    %v1673 = vpop.f32.mrf.mxu0
    %v1674 = vpop.f32.mrf.mxu0
    %v1675 = vadd.f32 0.0, %v1674
    %v1676 = vpop.f32.mrf.mxu0
    %1677 = vmatprep.mubr.bf16.mxu0 0
    %1678 = vmatmul.mubr.bf16.gmra.mxu0 %v1423
    %v1679 = vpop.f32.mrf.mxu0
    %v1680 = vadd.f32 0.0, %v1679
    %v1681 = vpop.f32.mrf.mxu0
    %v1682 = vpop.f32.mrf.mxu0
    %v1683 = vadd.f32 0.0, %v1682
    %v1684 = vpop.f32.mrf.mxu0
    %1685 = vdwg.mxu0
    %1686 = vmatprep.subr.mxu0 0.0
    %1687 = vmatpush1.msra.mxu0 0.0
    %1688 = vmatprep.subr.mxu0 0.0
    %1689 = vmatpush1.msra.mxu0 0.0
    %1690 = vmatprep.subr.mxu0 0.0
    %1691 = vmatpush1.msra.mxu0 0.0
    %1692 = vmatprep.subr.mxu0 0.0
    %1693 = vmatpush1.msra.mxu0 0.0
    %1694 = vmatprep.subr.mxu0 0.0
    %1695 = vmatpush1.msra.mxu0 0.0
    %1696 = vmatprep.subr.mxu0 0.0
    %1697 = vmatpush1.msra.mxu0 0.0
    %1698 = vmatprep.subr.mxu0 0.0
    %1699 = vmatpush1.msra.mxu0 0.0
    %1700 = vmatprep.subr.mxu0 0.0
    %1701 = vmatpush1.msra.mxu0 0.0
    %1702 = vmatprep.subr.mxu0 0.0
    %1703 = vmatpush1.msra.mxu0 0.0
    %1704 = vmatprep.subr.mxu0 0.0
    %1705 = vmatpush1.msra.mxu0 0.0
    %1706 = vmatprep.subr.mxu0 0.0
    %1707 = vmatpush1.msra.mxu0 0.0
    %1708 = vmatprep.subr.mxu0 0.0
    %1709 = vmatpush1.msra.mxu0 0.0
    %1710 = vmatprep.subr.mxu0 0.0
    %1711 = vmatpush1.msra.mxu0 %v1633
    %1712 = vmatprep.subr.mxu0 0.0
    %1713 = vmatpush1.msra.mxu0 %v1629
    %1714 = vmatprep.subr.mxu0 0.0
    %1715 = vmatpush1.msra.mxu0 %v1623
    %1716 = vmatprep.subr.mxu0 0.0
    %1717 = vmatpush1.msra.mxu0 %v1619
    %1718 = vmatprep.subr.mxu0 0.0
    %1719 = vmatpush2.msra.mxu0 0.0
    %1720 = vmatprep.subr.mxu0 0.0
    %1721 = vmatpush2.msra.mxu0 0.0
    %1722 = vmatprep.subr.mxu0 0.0
    %1723 = vmatpush2.msra.mxu0 0.0
    %1724 = vmatprep.subr.mxu0 0.0
    %1725 = vmatpush2.msra.mxu0 0.0
    %1726 = vmatprep.subr.mxu0 0.0
    %1727 = vmatpush2.msra.mxu0 0.0
    %1728 = vmatprep.subr.mxu0 0.0
    %1729 = vmatpush2.msra.mxu0 0.0
    %1730 = vmatprep.subr.mxu0 0.0
    %1731 = vmatpush2.msra.mxu0 0.0
    %1732 = vmatprep.subr.mxu0 0.0
    %1733 = vmatpush2.msra.mxu0 0.0
    %1734 = vmatprep.subr.mxu0 0.0
    %1735 = vmatpush2.msra.mxu0 0.0
    %1736 = vmatprep.subr.mxu0 0.0
    %1737 = vmatpush2.msra.mxu0 0.0
    %1738 = vmatprep.subr.mxu0 0.0
    %1739 = vmatpush2.msra.mxu0 0.0
    %1740 = vmatprep.subr.mxu0 0.0
    %1741 = vmatpush2.msra.mxu0 0.0
    %1742 = vmatprep.subr.mxu0 0.0
    %1743 = vmatpush2.msra.mxu0 0.0
    %1744 = vmatprep.subr.mxu0 0.0
    %1745 = vmatpush2.msra.mxu0 0.0
    %1746 = vmatprep.subr.mxu0 0.0
    %1747 = vmatpush2.msra.mxu0 0.0
    %1748 = vmatprep.subr.mxu0 0.0
    %1749 = vmatpush2.msra.mxu0 0.0
    %1750 = vmatprep.mubr.f32.mxu0 0.0
    %1751 = vmatmul.mubr.f32.gmra.mxu0 %v367
    %v1752 = vpop.f32.mrf.mxu0
    %v1753 = vadd.f32 0.0, %v1752
    %v1754 = vpop.f32.mrf.mxu0
    %1755 = vmatprep.mubr.f32.mxu0 0.0
    %1756 = vmatmul.mubr.f32.gmra.mxu0 %v370
    %v1757 = vpop.f32.mrf.mxu0
    %v1758 = vadd.f32 0.0, %v1757
    %v1759 = vpop.f32.mrf.mxu0
    %1760 = vmatprep.mubr.f32.mxu0 0.0
    %1761 = vmatmul.mubr.f32.gmra.mxu0 %v373
    %v1762 = vpop.f32.mrf.mxu0
    %v1763 = vadd.f32 0.0, %v1762
    %v1764 = vpop.f32.mrf.mxu0
    %1765 = vmatprep.mubr.f32.mxu0 0.0
    %1766 = vmatmul.mubr.f32.gmra.mxu0 %v376
    %v1767 = vpop.f32.mrf.mxu0
    %v1768 = vadd.f32 0.0, %v1767
    %v1769 = vpop.f32.mrf.mxu0
    %1770 = vdwg.mxu0
    %v1771 = vadd.f32 %v1621, %v1753
    %v1772 = vadd.f32 %v1625, %v1758
    %v1773 = vadd.f32 %v1631, %v1763
    %v1774 = vadd.f32 %v1635, %v1768
    %1775 = vmatprep.subr.mxu0 0.0
    %1776 = vmatpush1.msra.mxu0 0.0
    %1777 = vmatprep.subr.mxu0 0.0
    %1778 = vmatpush1.msra.mxu0 0.0
    %1779 = vmatprep.subr.mxu0 0.0
    %1780 = vmatpush1.msra.mxu0 0.0
    %1781 = vmatprep.subr.mxu0 0.0
    %1782 = vmatpush1.msra.mxu0 0.0
    %1783 = vmatprep.subr.mxu0 0.0
    %1784 = vmatpush1.msra.mxu0 0.0
    %1785 = vmatprep.subr.mxu0 0.0
    %1786 = vmatpush1.msra.mxu0 0.0
    %1787 = vmatprep.subr.mxu0 0.0
    %1788 = vmatpush1.msra.mxu0 0.0
    %1789 = vmatprep.subr.mxu0 0.0
    %1790 = vmatpush1.msra.mxu0 0.0
    %1791 = vmatprep.subr.mxu0 0.0
    %1792 = vmatpush1.msra.mxu0 0.0
    %1793 = vmatprep.subr.mxu0 0.0
    %1794 = vmatpush1.msra.mxu0 0.0
    %1795 = vmatprep.subr.mxu0 0.0
    %1796 = vmatpush1.msra.mxu0 0.0
    %1797 = vmatprep.subr.mxu0 0.0
    %1798 = vmatpush1.msra.mxu0 0.0
    %1799 = vmatprep.subr.mxu0 0.0
    %1800 = vmatpush1.msra.mxu0 %v1683
    %1801 = vmatprep.subr.mxu0 0.0
    %1802 = vmatpush1.msra.mxu0 %v1680
    %1803 = vmatprep.subr.mxu0 0.0
    %1804 = vmatpush1.msra.mxu0 %v1675
    %1805 = vmatprep.subr.mxu0 0.0
    %1806 = vmatpush1.msra.mxu0 %v1672
    %1807 = vmatprep.subr.mxu0 0.0
    %1808 = vmatpush2.msra.mxu0 0.0
    %1809 = vmatprep.subr.mxu0 0.0
    %1810 = vmatpush2.msra.mxu0 0.0
    %1811 = vmatprep.subr.mxu0 0.0
    %1812 = vmatpush2.msra.mxu0 0.0
    %1813 = vmatprep.subr.mxu0 0.0
    %1814 = vmatpush2.msra.mxu0 0.0
    %1815 = vmatprep.subr.mxu0 0.0
    %1816 = vmatpush2.msra.mxu0 0.0
    %1817 = vmatprep.subr.mxu0 0.0
    %1818 = vmatpush2.msra.mxu0 0.0
    %1819 = vmatprep.subr.mxu0 0.0
    %1820 = vmatpush2.msra.mxu0 0.0
    %1821 = vmatprep.subr.mxu0 0.0
    %1822 = vmatpush2.msra.mxu0 0.0
    %1823 = vmatprep.subr.mxu0 0.0
    %1824 = vmatpush2.msra.mxu0 0.0
    %1825 = vmatprep.subr.mxu0 0.0
    %1826 = vmatpush2.msra.mxu0 0.0
    %1827 = vmatprep.subr.mxu0 0.0
    %1828 = vmatpush2.msra.mxu0 0.0
    %1829 = vmatprep.subr.mxu0 0.0
    %1830 = vmatpush2.msra.mxu0 0.0
    %1831 = vmatprep.subr.mxu0 0.0
    %1832 = vmatpush2.msra.mxu0 0.0
    %1833 = vmatprep.subr.mxu0 0.0
    %1834 = vmatpush2.msra.mxu0 0.0
    %1835 = vmatprep.subr.mxu0 0.0
    %1836 = vmatpush2.msra.mxu0 0.0
    %1837 = vmatprep.subr.mxu0 0.0
    %1838 = vmatpush2.msra.mxu0 0.0
    %1839 = vmatprep.mubr.f32.mxu0 0.0
    %1840 = vmatmul.mubr.f32.gmra.mxu0 %v472
    %v1841 = vpop.f32.mrf.mxu0
    %v1842 = vadd.f32 0.0, %v1841
    %v1843 = vpop.f32.mrf.mxu0
    %1844 = vmatprep.mubr.f32.mxu0 0.0
    %1845 = vmatmul.mubr.f32.gmra.mxu0 %v475
    %v1846 = vpop.f32.mrf.mxu0
    %v1847 = vadd.f32 0.0, %v1846
    %v1848 = vpop.f32.mrf.mxu0
    %1849 = vmatprep.mubr.f32.mxu0 0.0
    %1850 = vmatmul.mubr.f32.gmra.mxu0 %v478
    %v1851 = vpop.f32.mrf.mxu0
    %v1852 = vadd.f32 0.0, %v1851
    %v1853 = vpop.f32.mrf.mxu0
    %1854 = vmatprep.mubr.f32.mxu0 0.0
    %1855 = vmatmul.mubr.f32.gmra.mxu0 %v481
    %v1856 = vpop.f32.mrf.mxu0
    %v1857 = vadd.f32 0.0, %v1856
    %v1858 = vpop.f32.mrf.mxu0
    %1859 = vdwg.mxu0
    %v1860 = vadd.f32 %v1771, %v1842
    %v1861 = vadd.f32 %v1772, %v1847
    %v1862 = vadd.f32 %v1773, %v1852
    %v1863 = vadd.f32 %v1774, %v1857
    %v1864 = vld [vmem:[#allocation10] sm:$0xf]
    %v1865 = vld [vmem:[#allocation10 + $0x4] sm:$0xf]
    %v1866 = vld [vmem:[#allocation10 + $0x8] sm:$0xf]
    %v1867 = vld [vmem:[#allocation10 + $0xc] sm:$0xf]
    %v1868 = vld [vmem:[#allocation10 + $0x10] sm:$0xf]
    %v1869 = vld [vmem:[#allocation10 + $0x14] sm:$0xf]
    %v1870 = vld [vmem:[#allocation10 + $0x18] sm:$0xf]
    %v1871 = vld [vmem:[#allocation10 + $0x1c] sm:$0xf]
    %v1880 = vunpack.c.l.b16 %v1864
    %v1881 = vunpack.c.l.b16 %v1865
    %v1882 = vunpack.c.l.b16 %v1866
    %v1883 = vunpack.c.l.b16 %v1867
    %v1884 = vunpack.c.l.b16 %v1868
    %v1885 = vunpack.c.l.b16 %v1869
    %v1886 = vunpack.c.l.b16 %v1870
    %v1887 = vunpack.c.l.b16 %v1871
    %v1888 = vpack.c.b16 %v1881, %v1880
    %v1889 = vpack.c.b16 %v1883, %v1882
    %v1890 = vpack.c.b16 %v1885, %v1884
    %v1891 = vpack.c.b16 %v1887, %v1886
    %1896 = vmatprep.subr.bf16.mxu0 0
    %1897 = vmatpush1.bf16.msra.mxu0 0
    %1898 = vmatprep.subr.bf16.mxu0 0
    %1899 = vmatpush1.bf16.msra.mxu0 0
    %1900 = vmatprep.subr.bf16.mxu0 0
    %1901 = vmatpush1.bf16.msra.mxu0 0
    %1902 = vmatprep.subr.bf16.mxu0 0
    %1903 = vmatpush1.bf16.msra.mxu0 0
    %1904 = vmatprep.subr.bf16.mxu0 0
    %1905 = vmatpush1.bf16.msra.mxu0 %v1891
    %1906 = vmatprep.subr.bf16.mxu0 0
    %1907 = vmatpush1.bf16.msra.mxu0 %v1890
    %1908 = vmatprep.subr.bf16.mxu0 0
    %1909 = vmatpush1.bf16.msra.mxu0 %v1889
    %1910 = vmatprep.subr.bf16.mxu0 0
    %1911 = vmatpush1.bf16.msra.mxu0 %v1888
    %1912 = vmatprep.subr.bf16.mxu0 0
    %1913 = vmatpush2.bf16.msra.mxu0 0
    %1914 = vmatprep.subr.bf16.mxu0 0
    %1915 = vmatpush2.bf16.msra.mxu0 0
    %1916 = vmatprep.subr.bf16.mxu0 0
    %1917 = vmatpush2.bf16.msra.mxu0 0
    %1918 = vmatprep.subr.bf16.mxu0 0
    %1919 = vmatpush2.bf16.msra.mxu0 0
    %1920 = vmatprep.subr.bf16.mxu0 0
    %1921 = vmatpush2.bf16.msra.mxu0 0
    %1922 = vmatprep.subr.bf16.mxu0 0
    %1923 = vmatpush2.bf16.msra.mxu0 0
    %1924 = vmatprep.subr.bf16.mxu0 0
    %1925 = vmatpush2.bf16.msra.mxu0 0
    %1926 = vmatprep.subr.bf16.mxu0 0
    %1927 = vmatpush2.bf16.msra.mxu0 0
    %1928 = vmatprep.mubr.bf16.mxu0 0
    %1929 = vmatmul.mubr.bf16.gmra.mxu0 %v254
    %v1930 = vpop.f32.mrf.mxu0
    %v1931 = vadd.f32 %v1860, %v1930
    %v1932 = vpop.f32.mrf.mxu0
    %v1933 = vpop.f32.mrf.mxu0
    %v1934 = vadd.f32 %v1861, %v1933
    %v1935 = vpop.f32.mrf.mxu0
    %1936 = vmatprep.mubr.bf16.mxu0 0
    %1937 = vmatmul.mubr.bf16.gmra.mxu0 %v257
    %v1938 = vpop.f32.mrf.mxu0
    %v1939 = vadd.f32 %v1862, %v1938
    %v1940 = vpop.f32.mrf.mxu0
    %v1941 = vpop.f32.mrf.mxu0
    %v1942 = vadd.f32 %v1863, %v1941
    %v1943 = vpop.f32.mrf.mxu0
    %1944 = vdwg.mxu0
    %v1945 = vadd.f32 %v1931, %v1934
    %v1946 = vadd.f32 %v1945, %v1939
    %v1947 = vadd.f32 %v1946, %v1942
    %v1948 = vrot.slane %v1947, 4
    %v1949 = vadd.f32 %v1947, %v1948
    %v1950 = vrot.slane %v1949, 2
    %v1951 = vadd.f32 %v1949, %v1950
    %v1952 = vrot.slane %v1951, 1
    %v1953 = vadd.f32 %v1951, %v1952
    %1954 = vmatprep.subr.mxu0 0.0
    %1955 = vmatpush1.msra.mxu0 %v587
    %1956 = vmatprep.subr.mxu0 0.0
    %1957 = vmatpush1.msra.mxu0 %v586
    %1958 = vmatprep.subr.mxu0 0.0
    %1959 = vmatpush1.msra.mxu0 %v585
    %1960 = vmatprep.subr.mxu0 0.0
    %1961 = vmatpush1.msra.mxu0 %v584
    %1962 = vmatprep.subr.mxu0 0.0
    %1963 = vmatpush1.msra.mxu0 %v583
    %1964 = vmatprep.subr.mxu0 0.0
    %1965 = vmatpush1.msra.mxu0 %v582
    %1966 = vmatprep.subr.mxu0 0.0
    %1967 = vmatpush1.msra.mxu0 %v581
    %1968 = vmatprep.subr.mxu0 0.0
    %1969 = vmatpush1.msra.mxu0 %v580
    %1970 = vmatprep.subr.mxu0 0.0
    %1971 = vmatpush1.msra.mxu0 %v579
    %1972 = vmatprep.subr.mxu0 0.0
    %1973 = vmatpush1.msra.mxu0 %v578
    %1974 = vmatprep.subr.mxu0 0.0
    %1975 = vmatpush1.msra.mxu0 %v577
    %1976 = vmatprep.subr.mxu0 0.0
    %1977 = vmatpush1.msra.mxu0 %v576
    %1978 = vmatprep.subr.mxu0 0.0
    %1979 = vmatpush1.msra.mxu0 %v575
    %1980 = vmatprep.subr.mxu0 0.0
    %1981 = vmatpush1.msra.mxu0 %v574
    %1982 = vmatprep.subr.mxu0 0.0
    %1983 = vmatpush1.msra.mxu0 %v573
    %1984 = vmatprep.subr.mxu0 0.0
    %1985 = vmatpush1.msra.mxu0 %v572
    %1986 = vmatprep.subr.mxu0 0.0
    %1987 = vmatpush2.msra.mxu0 0.0
    %1988 = vmatprep.subr.mxu0 0.0
    %1989 = vmatpush2.msra.mxu0 0.0
    %1990 = vmatprep.subr.mxu0 0.0
    %1991 = vmatpush2.msra.mxu0 0.0
    %1992 = vmatprep.subr.mxu0 0.0
    %1993 = vmatpush2.msra.mxu0 0.0
    %1994 = vmatprep.subr.mxu0 0.0
    %1995 = vmatpush2.msra.mxu0 0.0
    %1996 = vmatprep.subr.mxu0 0.0
    %1997 = vmatpush2.msra.mxu0 0.0
    %1998 = vmatprep.subr.mxu0 0.0
    %1999 = vmatpush2.msra.mxu0 0.0
    %2000 = vmatprep.subr.mxu0 0.0
    %2001 = vmatpush2.msra.mxu0 0.0
    %2002 = vmatprep.subr.mxu0 0.0
    %2003 = vmatpush2.msra.mxu0 0.0
    %2004 = vmatprep.subr.mxu0 0.0
    %2005 = vmatpush2.msra.mxu0 0.0
    %2006 = vmatprep.subr.mxu0 0.0
    %2007 = vmatpush2.msra.mxu0 0.0
    %2008 = vmatprep.subr.mxu0 0.0
    %2009 = vmatpush2.msra.mxu0 0.0
    %2010 = vmatprep.subr.mxu0 0.0
    %2011 = vmatpush2.msra.mxu0 0.0
    %2012 = vmatprep.subr.mxu0 0.0
    %2013 = vmatpush2.msra.mxu0 0.0
    %2014 = vmatprep.subr.mxu0 0.0
    %2015 = vmatpush2.msra.mxu0 0.0
    %2016 = vmatprep.subr.mxu0 0.0
    %2017 = vmatpush2.msra.mxu0 0.0
    %2018 = vmatprep.mubr.f32.mxu0 0.0
    %2019 = vmatmul.mubr.f32.gmra.mxu0 %v1953
    %v2020 = vpop.f32.mrf.mxu0
    %v2021 = vadd.f32 0.0, %v2020
    %v2022 = vpop.f32.mrf.mxu0
    %2023 = vdwg.mxu0
    %v2024 = vlaneseq
    %v2025 = vshrl.u32 %v2024, 7
    %v2026 = vsub.s32 0, %v2025
    %v2027 = vrot.slane %v2021, %v2026
    %v2028 = vsub.f32 %v1931, %v2027
    %v2029 = vsub.f32 %v1934, %v2027
    %v2030 = vsub.f32 %v1939, %v2027
    %v2031 = vsub.f32 %v1942, %v2027
    %v2032 = vmul.f32 %v2028, %v2028
    %v2033 = vmul.f32 %v2029, %v2029
    %v2034 = vmul.f32 %v2030, %v2030
    %v2035 = vmul.f32 %v2031, %v2031
    %v2036 = vadd.f32 %v2032, %v2033
    %v2037 = vadd.f32 %v2036, %v2034
    %v2038 = vadd.f32 %v2037, %v2035
    %v2039 = vrot.slane %v2038, 4
    %v2040 = vadd.f32 %v2038, %v2039
    %v2041 = vrot.slane %v2040, 2
    %v2042 = vadd.f32 %v2040, %v2041
    %v2043 = vrot.slane %v2042, 1
    %v2044 = vadd.f32 %v2042, %v2043
    %2045 = vmatprep.subr.mxu0 0.0
    %2046 = vmatpush1.msra.mxu0 %v587
    %2047 = vmatprep.subr.mxu0 0.0
    %2048 = vmatpush1.msra.mxu0 %v586
    %2049 = vmatprep.subr.mxu0 0.0
    %2050 = vmatpush1.msra.mxu0 %v585
    %2051 = vmatprep.subr.mxu0 0.0
    %2052 = vmatpush1.msra.mxu0 %v584
    %2053 = vmatprep.subr.mxu0 0.0
    %2054 = vmatpush1.msra.mxu0 %v583
    %2055 = vmatprep.subr.mxu0 0.0
    %2056 = vmatpush1.msra.mxu0 %v582
    %2057 = vmatprep.subr.mxu0 0.0
    %2058 = vmatpush1.msra.mxu0 %v581
    %2059 = vmatprep.subr.mxu0 0.0
    %2060 = vmatpush1.msra.mxu0 %v580
    %2061 = vmatprep.subr.mxu0 0.0
    %2062 = vmatpush1.msra.mxu0 %v579
    %2063 = vmatprep.subr.mxu0 0.0
    %2064 = vmatpush1.msra.mxu0 %v578
    %2065 = vmatprep.subr.mxu0 0.0
    %2066 = vmatpush1.msra.mxu0 %v577
    %2067 = vmatprep.subr.mxu0 0.0
    %2068 = vmatpush1.msra.mxu0 %v576
    %2069 = vmatprep.subr.mxu0 0.0
    %2070 = vmatpush1.msra.mxu0 %v575
    %2071 = vmatprep.subr.mxu0 0.0
    %2072 = vmatpush1.msra.mxu0 %v574
    %2073 = vmatprep.subr.mxu0 0.0
    %2074 = vmatpush1.msra.mxu0 %v573
    %2075 = vmatprep.subr.mxu0 0.0
    %2076 = vmatpush1.msra.mxu0 %v572
    %2077 = vmatprep.subr.mxu0 0.0
    %2078 = vmatpush2.msra.mxu0 0.0
    %2079 = vmatprep.subr.mxu0 0.0
    %2080 = vmatpush2.msra.mxu0 0.0
    %2081 = vmatprep.subr.mxu0 0.0
    %2082 = vmatpush2.msra.mxu0 0.0
    %2083 = vmatprep.subr.mxu0 0.0
    %2084 = vmatpush2.msra.mxu0 0.0
    %2085 = vmatprep.subr.mxu0 0.0
    %2086 = vmatpush2.msra.mxu0 0.0
    %2087 = vmatprep.subr.mxu0 0.0
    %2088 = vmatpush2.msra.mxu0 0.0
    %2089 = vmatprep.subr.mxu0 0.0
    %2090 = vmatpush2.msra.mxu0 0.0
    %2091 = vmatprep.subr.mxu0 0.0
    %2092 = vmatpush2.msra.mxu0 0.0
    %2093 = vmatprep.subr.mxu0 0.0
    %2094 = vmatpush2.msra.mxu0 0.0
    %2095 = vmatprep.subr.mxu0 0.0
    %2096 = vmatpush2.msra.mxu0 0.0
    %2097 = vmatprep.subr.mxu0 0.0
    %2098 = vmatpush2.msra.mxu0 0.0
    %2099 = vmatprep.subr.mxu0 0.0
    %2100 = vmatpush2.msra.mxu0 0.0
    %2101 = vmatprep.subr.mxu0 0.0
    %2102 = vmatpush2.msra.mxu0 0.0
    %2103 = vmatprep.subr.mxu0 0.0
    %2104 = vmatpush2.msra.mxu0 0.0
    %2105 = vmatprep.subr.mxu0 0.0
    %2106 = vmatpush2.msra.mxu0 0.0
    %2107 = vmatprep.subr.mxu0 0.0
    %2108 = vmatpush2.msra.mxu0 0.0
    %2109 = vmatprep.mubr.f32.mxu0 0.0
    %2110 = vmatmul.mubr.f32.gmra.mxu0 %v2044
    %v2111 = vpop.f32.mrf.mxu0
    %v2112 = vadd.f32 1e-05, %v2111
    %v2113 = vpop.f32.mrf.mxu0
    %2114 = vdwg.mxu0
    %v2115 = vrsqrt.pop %v2112
    %v2116 = vld [vmem:[%s12] sm:$0x1]
    %v2117 = vmul.f32 %v2115, %v2116
    %v2118 = vlaneseq
    %v2119 = vshrl.u32 %v2118, 7
    %v2120 = vsub.s32 0, %v2119
    %v2121 = vrot.slane %v2117, %v2120
    %v2122 = vmul.f32 %v2028, %v2121
    %v2123 = vmul.f32 %v2029, %v2121
    %v2124 = vmul.f32 %v2030, %v2121
    %v2125 = vmul.f32 %v2031, %v2121
    %v2126 = vld [vmem:[%s13] sm:$0x1]
    %v2128 = vlaneseq
    %v2129 = vshrl.u32 %v2128, 7
    %v2130 = vsub.s32 0, %v2129
    %v2131 = vrot.slane %v2126, %v2130
    %v2133 = vadd.f32 %v2122, %v2131
    %v2134 = vadd.f32 %v2123, %v2131
    %v2135 = vadd.f32 %v2124, %v2131
    %v2136 = vadd.f32 %v2125, %v2131
    %v2137 = vmax.f32 %v2133, 0.0
    %v2138 = vmax.f32 %v2134, 0.0
    %v2139 = vmax.f32 %v2135, 0.0
    %v2140 = vmax.f32 %v2136, 0.0
    %2141 = vst [vmem:[#allocation16] sm:$0xff] %v2137
    %2142 = vst [vmem:[#allocation16 + $0x8] sm:$0xff] %v2138
    %2143 = vst [vmem:[#allocation16 + $0x10] sm:$0xff] %v2139
    %2144 = vst [vmem:[#allocation16 + $0x18] sm:$0xff] %v2140
    // Predicated region
    $region90: #{tpu_custom_call.1} parent=1 // pred_check
      _
    $region91: #{tpu_custom_call.1} parent=1 // pred_check_branch
      %2146 = sbr.rel (0) target = $region93
    $region92: #{tpu_custom_call.1} parent=1 // pred_region
      %s2148 = ssub.s32 512, 512
      %2149 = vsyncadd [#allocation4], %s2148
      %s2150 = sshll.u32 [#allocation16], 4
      %s2151 = int_to_ptr.vmem [resolvable:$true] %s2150
      %2156 = dma.vmem_to_hbm [thread:$0]  %s2151, 512, %s14, [#allocation4], 128, 128, 8
    $region93: #{tpu_custom_call.1} parent=1 // pred_fallthru
      _
    // Predicated region
    $region94: #{tpu_custom_call.1} parent=1 // pred_check
      _
    $region95: #{tpu_custom_call.1} parent=1 // pred_check_branch
      %2158 = sbr.rel (0) target = $region97
    $region96: #{tpu_custom_call.1} parent=1 // pred_region
      %2159 = dma.done [#allocation4], 512
    $region97: #{tpu_custom_call.1} parent=1 // pred_fallthru
      _
    %2160 = vsyncpa [#allocation3], 1
    %2161 = vsyncpa [#allocation6], 1
    %2162 = vsyncpa [#allocation9], 1
    %2163 = vsyncpa [#allocation12], 1
    %2164 = vsyncpa [#allocation15], 1
    %2165 = vsyncpa [#allocation4], 1

</llo_original>
